<compile_context>
chip_gen: v5e
topology: v5e:2x2
jax: 0.10.0
libtpu: 0.0.40
codegen_flags: <defaults>
</compile_context>

<pallas_src>
import functools

import jax
import jax.numpy as jnp
from jax import lax
from jax.experimental import pallas as pl
from jax.experimental.pallas import tpu as pltpu

EPS = 1e-5
VMEM_LIMIT = 48 << 20   # < v7x's 64 MiB physical VMEM per TensorCore; plenty here.


# ---------------------------------------------------------------------------
# Kernels
# ---------------------------------------------------------------------------
def _conv_stats_kernel(*refs, th, pre_act, pad_out):
    """Fused [prev-layer BN-apply + ReLU] + Conv3x3 + BatchNorm partial stats.

    refs (pre_act=True) : xb, scale, shift, wband, conv_out, stats_out
    refs (pre_act=False): xb,               wband, conv_out, stats_out

    xb         : (1, th+2, W*Cin)    input block, H-padded by one row each side
    scale/shift: (1, W*Cin)          previous layer's BN scale/shift lane vectors
    wband      : (3, W*Cin, W*Cout)  banded weights (dx taps + W zero-pad folded in)
    conv_out   : (1, th(+2), W*Cout) raw conv output (H-padded iff pad_out)
    stats_out  : (1, 2, W*Cout)      per-image [sum ; sum of squares] over rows
    """
    if pre_act:
        xb_ref, scale_ref, shift_ref, wb_ref, conv_ref, stats_ref = refs
    else:
        xb_ref, wb_ref, conv_ref, stats_ref = refs
    wcout = wb_ref.shape[-1]

    if pre_act:
        # Previous layer's BN + ReLU, fused on the loaded block (cheap VPU work,
        # hidden under the MXU slot).  The two halo rows hold the previous
        # conv's H-padding; relu(0*scale + shift) != 0, so zero them by row index.
        x = xb_ref[0]                                            # (th+2, W*Cin)
        a = jnp.maximum(x * scale_ref[...] + shift_ref[...], 0.0)
        row = lax.broadcasted_iota(jnp.int32, (th + 2, 1), 0)
        a = jnp.where((row >= 1) & (row <= th), a, 0.0)
        taps = [a[dy:dy + th, :] for dy in range(3)]
    else:
        # First layer: raw input, halo rows are true zeros.  Slice the ref per
        # tap so Mosaic folds the row offset into the load.
        taps = [xb_ref[0, dy:dy + th, :] for dy in range(3)]

    acc = jnp.zeros((th, wcout), jnp.float32)
    for dy in range(3):                      # 3 MXU dots: K = W*Cin, N = W*Cout
        acc = acc + jnp.dot(taps[dy], wb_ref[dy],
                            preferred_element_type=jnp.float32)

    if pad_out:
        # Write the conv output pre-padded along H so the next conv layer can
        # consume it directly (no XLA pad pass between the layers).
        zrow = jnp.zeros((1, wcout), jnp.float32)
        conv_ref[...] = jnp.concatenate([zrow, acc, zrow], axis=0)[None]
    else:
        conv_ref[...] = acc[None]

    # Per-image BatchNorm partial statistics: two direct lane-dense row stores.
    stats_ref[0, 0:1, :] = jnp.sum(acc, axis=0, keepdims=True)
    stats_ref[0, 1:2, :] = jnp.sum(acc * acc, axis=0, keepdims=True)


def _bn_relu_kernel(conv_ref, scale_ref, shift_ref, o_ref):
    """Final layer only: y = relu(conv * scale + shift); full-H lane-dense blocks."""
    o_ref[...] = jnp.maximum(conv_ref[...] * scale_ref[...] + shift_ref[...], 0.0)


# ---------------------------------------------------------------------------
# Wrappers
# ---------------------------------------------------------------------------
def _make_band_weights(w_hwio, W):
    """band[dy, wi*Cin+ci, wo*Cout+co] = w[dy, wi-wo+1, ci, co] if |wi-wo|<=1 else 0."""
    _, _, cin, cout = w_hwio.shape
    wi = jnp.arange(W)[:, None]
    wo = jnp.arange(W)[None, :]
    band = jnp.zeros((3, W, cin, W, cout), w_hwio.dtype)
    for dx in range(3):                                   # dx offset = dx - 1
        sel = (wi - wo == dx - 1).astype(w_hwio.dtype)    # (W, W)
        band = band + (sel[None, :, None, :, None] *
                       w_hwio[:, dx][:, None, :, None, :])
    return band.reshape(3, W * cin, W * cout)


def _conv_layer(x_pad_slab, wband, scale_in=None, shift_in=None, *, pad_out):
    """Run the fused conv+stats kernel over grid=(batch,) with full-H blocks."""
    n, hp2, wcin = x_pad_slab.shape
    h = hp2 - 2
    wcout = wband.shape[-1]
    # The banded-weight trick is only sensible while it is a few MiB of VMEM.
    assert wband.size * 4 <= (8 << 20), (
        "banded weights too large; tile W / use the 9-matmul K=Cin path instead")
    pre_act = scale_in is not None

    kernel = functools.partial(_conv_stats_kernel,
                               th=h, pre_act=pre_act, pad_out=pad_out)
    in_specs = [pl.BlockSpec((1, hp2, wcin), lambda i: (i, 0, 0))]
    args = [x_pad_slab]
    if pre_act:
        in_specs += [pl.BlockSpec((1, wcin), lambda i: (0, 0)),
                     pl.BlockSpec((1, wcin), lambda i: (0, 0))]
        args += [scale_in, shift_in]
    in_specs.append(pl.BlockSpec((3, wcin, wcout), lambda i: (0, 0, 0)))  # VMEM-resident
    args.append(wband)

    out_h = hp2 if pad_out else h
    conv, stats = pl.pallas_call(
        kernel,
        out_shape=(jax.ShapeDtypeStruct((n, out_h, wcout), jnp.float32),
                   jax.ShapeDtypeStruct((n, 2, wcout), jnp.float32)),
        grid=(n,),
        in_specs=in_specs,
        out_specs=(pl.BlockSpec((1, out_h, wcout), lambda i: (i, 0, 0)),
                   pl.BlockSpec((1, 2, wcout), lambda i: (i, 0, 0))),
        compiler_params=pltpu.CompilerParams(
            dimension_semantics=("parallel",),
            vmem_limit_bytes=VMEM_LIMIT),
    )(*args)
    return conv, stats


def _bn_relu(conv_slab, scale, shift):
    n, h, wcout = conv_slab.shape
    return pl.pallas_call(
        _bn_relu_kernel,
        out_shape=jax.ShapeDtypeStruct((n, h, wcout), jnp.float32),
        grid=(n,),
        in_specs=[pl.BlockSpec((1, h, wcout), lambda i: (i, 0, 0)),
                  pl.BlockSpec((1, wcout), lambda i: (0, 0)),
                  pl.BlockSpec((1, wcout), lambda i: (0, 0))],
        out_specs=pl.BlockSpec((1, h, wcout), lambda i: (i, 0, 0)),
        compiler_params=pltpu.CompilerParams(
            dimension_semantics=("parallel",),
            vmem_limit_bytes=VMEM_LIMIT),
    )(conv_slab, scale, shift)


def _bn_scale_shift(stats, gamma, beta, n, h, w):
    """Finalize train-mode BatchNorm: tiny (Cout,)-sized math in plain JAX,
    returned as (1, W*Cout) lane vectors so the kernels stay lane dense."""
    cout = gamma.shape[0]
    s = stats.sum(axis=0).reshape(2, w, cout).sum(axis=1)   # (2, Cout)
    count = n * h * w
    mean = s[0] / count
    var = s[1] / count - mean * mean            # biased variance (train-mode BN)
    scale = gamma * lax.rsqrt(var + EPS)
    shift = beta - mean * scale
    return jnp.tile(scale, w)[None, :], jnp.tile(shift, w)[None, :]


def double_conv2d(x_nchw, params):
    """DoubleConv2D forward (batch_norm=True). (N, Cin, H, W) -> (N, Cout, H, W)."""
    n, cin, h, w = x_nchw.shape
    cout = params["g1"].shape[0]

    # Lane-dense slab (N, H, W*Cin); zero-pad H by one row each side, once, for
    # the first conv's halo.  (Layer-1's W*Cin may be < 128 -> lane-masked loads;
    # padding Cin would remove that at 2x input size.  Left as-is: tiny layer.)
    x_slab = jnp.transpose(x_nchw, (0, 2, 3, 1)).reshape(n, h, w * cin)
    x_pad = jnp.pad(x_slab, ((0, 0), (1, 1), (0, 0)))

    wband1 = _make_band_weights(params["w1"], w)
    wband2 = _make_band_weights(params["w2"], w)

    # Layer 1: conv + BN stats.  The conv output is written pre-padded along H.
    conv1_pad, stats1 = _conv_layer(x_pad, wband1, pad_out=True)
    scale1, shift1 = _bn_scale_shift(stats1, params["g1"], params["beta1"], n, h, w)

    # Layer 2: BN1-apply + ReLU fused into the conv kernel; output is raw conv2.
    conv2, stats2 = _conv_layer(conv1_pad, wband2, scale1, shift1, pad_out=False)
    scale2, shift2 = _bn_scale_shift(stats2, params["g2"], params["beta2"], n, h, w)

    # Final BatchNorm + ReLU (standalone: batch statistics are only known once
    # all of conv2 is done, so this pass cannot be fused further).
    y = _bn_relu(conv2, scale2, shift2)
    return jnp.transpose(y.reshape(n, h, w, cout), (0, 3, 1, 2))


def init_params(key, in_channels, out_channels):
    k1, k2 = jax.random.split(key)
    return {
        # Conv weights in HWIO.  The conv bias is intentionally omitted: with
        # train-mode BatchNorm right after each conv it is exactly cancelled by
        # the batch-mean subtraction (eval-mode/running-stats BN would need it).
        "w1": 0.1 * jax.random.normal(k1, (3, 3, in_channels, out_channels), jnp.float32),
        "g1": jnp.ones((out_channels,), jnp.float32),
        "beta1": jnp.zeros((out_channels,), jnp.float32),
        "w2": 0.1 * jax.random.normal(k2, (3, 3, out_channels, out_channels), jnp.float32),
        "g2": jnp.ones((out_channels,), jnp.float32),
        "beta2": jnp.zeros((out_channels,), jnp.float32),
    }


def _reference_double_conv(x_nchw, params, precision):
    """Plain-JAX reference of the PyTorch module (train-mode BN, no bias)."""
    def layer(x, w_hwio, gamma, beta):
        w_oihw = jnp.transpose(w_hwio, (3, 2, 0, 1))
        z = lax.conv_general_dilated(
            x, w_oihw, window_strides=(1, 1), padding=((1, 1), (1, 1)),
            dimension_numbers=("NCHW", "OIHW", "NCHW"), precision=precision)
        mean = z.mean(axis=(0, 2, 3), keepdims=True)
        var = ((z - mean) ** 2).mean(axis=(0, 2, 3), keepdims=True)
        zn = (z - mean) * lax.rsqrt(var + EPS)
        return jnp.maximum(zn * gamma[None, :, None, None] + beta[None, :, None, None], 0.0)

    y = layer(x_nchw, params["w1"], params["g1"], params["beta1"])
    return layer(y, params["w2"], params["g2"], params["beta2"])


if __name__ == "__main__":
    key = jax.random.PRNGKey(0)
    kx, kp = jax.random.split(key)

    N, Cin, H, W = 2, 4, 16, 16
    Cout = 8
    x = jax.random.normal(kx, (N, Cin, H, W), jnp.float32)     # NCHW, like PyTorch
    params = init_params(kp, Cin, Cout)

    out = jax.block_until_ready(jax.jit(double_conv2d)(x, params))
    assert out.shape == (N, Cout, H, W), out.shape

    # Numerical check against a plain-JAX reference of the module.  Tolerance is
    # 1e-4 for a full-precision f32 matmul path; it is widened only if this
    # platform's *default* f32 matmul precision is reduced (bf16 passes), which
    # is measured on the XLA reference itself rather than guessed.
    ref_hi = _reference_double_conv(x, params, lax.Precision.HIGHEST)
    ref_lo = _reference_double_conv(x, params, lax.Precision.DEFAULT)
    prec_gap = float(jnp.max(jnp.abs(ref_hi - ref_lo)))
    tol = max(1e-4, 10.0 * prec_gap)
    err = float(jnp.max(jnp.abs(out - ref_hi)))
    assert err < tol, f"max abs error {err} (tol {tol})"
    print("KERNEL_OK")
</pallas_src>

<mosaic_0001>
module attributes {stable_mosaic.version = 11 : i64} {
  func.func @_conv_stats_kernel(%arg0: i32, %arg1: memref<1x18x64xf32, #tpu.memory_space<vmem>>, %arg2: memref<3x64x128xf32, #tpu.memory_space<vmem>>, %arg3: memref<1x18x128xf32, #tpu.memory_space<vmem>>, %arg4: memref<1x2x128xf32, #tpu.memory_space<vmem>>) attributes {dimension_semantics = [#tpu.dimension_semantics<parallel>], iteration_bounds = array<i64: 2>, scalar_prefetch = 0 : i64, scratch_operands = 0 : i64, tpu.core_type = #tpu.core_type<tc>, window_params = [{transform_indices = @transform_0, window_bounds = array<i64: 1, 18, 64>}, {pipeline_mode = #tpu.pipeline_mode<synchronous>, transform_indices = @transform_1, window_bounds = array<i64: 3, 64, 128>}, {transform_indices = @transform_2, window_bounds = array<i64: 1, 18, 128>}, {transform_indices = @transform_3, window_bounds = array<i64: 1, 2, 128>}]} {
    %c0 = arith.constant 0 : index
    %c0_0 = arith.constant 0 : index
    %c0_1 = arith.constant 0 : index
    %0 = vector.load %arg1[%c0, %c0_0, %c0_1] : memref<1x18x64xf32, #tpu.memory_space<vmem>>, vector<1x16x64xf32>
    %1 = vector.shape_cast %0 : vector<1x16x64xf32> to vector<16x64xf32>
    %c0_2 = arith.constant 0 : index
    %c1 = arith.constant 1 : index
    %c0_3 = arith.constant 0 : index
    %2 = vector.load %arg1[%c0_2, %c1, %c0_3] : memref<1x18x64xf32, #tpu.memory_space<vmem>>, vector<1x16x64xf32>
    %3 = vector.shape_cast %2 : vector<1x16x64xf32> to vector<16x64xf32>
    %c0_4 = arith.constant 0 : index
    %c2 = arith.constant 2 : index
    %c0_5 = arith.constant 0 : index
    %4 = vector.load %arg1[%c0_4, %c2, %c0_5] : memref<1x18x64xf32, #tpu.memory_space<vmem>>, vector<1x16x64xf32>
    %5 = vector.shape_cast %4 : vector<1x16x64xf32> to vector<16x64xf32>
    %cst = arith.constant 0.000000e+00 : f32
    %6 = vector.broadcast %cst : f32 to vector<16x128xf32>
    %c0_6 = arith.constant 0 : index
    %c0_7 = arith.constant 0 : index
    %c0_8 = arith.constant 0 : index
    %7 = vector.load %arg2[%c0_6, %c0_7, %c0_8] : memref<3x64x128xf32, #tpu.memory_space<vmem>>, vector<1x64x128xf32>
    %8 = vector.shape_cast %7 : vector<1x64x128xf32> to vector<64x128xf32>
    %cst_9 = arith.constant dense<0.000000e+00> : vector<16x128xf32>
    %9 = tpu.matmul %1, %8, %cst_9 {dimension_numbers = #tpu.dot_dimension_numbers<[1], [0], [0], [1], [0, 0, 1, 1], [], []>} : vector<16x64xf32>, vector<64x128xf32>, vector<16x128xf32> -> vector<16x128xf32>
    %10 = arith.addf %6, %9 : vector<16x128xf32>
    %c1_10 = arith.constant 1 : index
    %c0_11 = arith.constant 0 : index
    %c0_12 = arith.constant 0 : index
    %11 = vector.load %arg2[%c1_10, %c0_11, %c0_12] : memref<3x64x128xf32, #tpu.memory_space<vmem>>, vector<1x64x128xf32>
    %12 = vector.shape_cast %11 : vector<1x64x128xf32> to vector<64x128xf32>
    %cst_13 = arith.constant dense<0.000000e+00> : vector<16x128xf32>
    %13 = tpu.matmul %3, %12, %cst_13 {dimension_numbers = #tpu.dot_dimension_numbers<[1], [0], [0], [1], [0, 0, 1, 1], [], []>} : vector<16x64xf32>, vector<64x128xf32>, vector<16x128xf32> -> vector<16x128xf32>
    %14 = arith.addf %10, %13 : vector<16x128xf32>
    %c2_14 = arith.constant 2 : index
    %c0_15 = arith.constant 0 : index
    %c0_16 = arith.constant 0 : index
    %15 = vector.load %arg2[%c2_14, %c0_15, %c0_16] : memref<3x64x128xf32, #tpu.memory_space<vmem>>, vector<1x64x128xf32>
    %16 = vector.shape_cast %15 : vector<1x64x128xf32> to vector<64x128xf32>
    %cst_17 = arith.constant dense<0.000000e+00> : vector<16x128xf32>
    %17 = tpu.matmul %5, %16, %cst_17 {dimension_numbers = #tpu.dot_dimension_numbers<[1], [0], [0], [1], [0, 0, 1, 1], [], []>} : vector<16x64xf32>, vector<64x128xf32>, vector<16x128xf32> -> vector<16x128xf32>
    %18 = arith.addf %14, %17 : vector<16x128xf32>
    %cst_18 = arith.constant 0.000000e+00 : f32
    %19 = vector.broadcast %cst_18 : f32 to vector<1x128xf32>
    %20 = tpu.concatenate %19, %18, %19 in 0 : vector<1x128xf32>, vector<16x128xf32>, vector<1x128xf32> -> vector<18x128xf32>
    %21 = vector.shape_cast %20 : vector<18x128xf32> to vector<1x18x128xf32>
    %c0_19 = arith.constant 0 : index
    %c0_20 = arith.constant 0 : index
    %c0_21 = arith.constant 0 : index
    %22 = vector.load %arg3[%c0_19, %c0_20, %c0_21] : memref<1x18x128xf32, #tpu.memory_space<vmem>>, vector<1x18x128xf32>
    tpu.vector_store %arg3[%c0_19, %c0_20, %c0_21], %21 {strides = array<i32>} : memref<1x18x128xf32, #tpu.memory_space<vmem>>, vector<1x18x128xf32>,
    %cst_22 = arith.constant dense<0.000000e+00> : vector<128xf32>
    %23 = vector.multi_reduction <add>, %18, %cst_22 [0] : vector<16x128xf32> to vector<128xf32>
    %24 = vector.shape_cast %23 : vector<128xf32> to vector<1x128xf32>
    %c0_23 = arith.constant 0 : index
    %c0_24 = arith.constant 0 : index
    %c0_25 = arith.constant 0 : index
    %25 = vector.load %arg4[%c0_23, %c0_24, %c0_25] : memref<1x2x128xf32, #tpu.memory_space<vmem>>, vector<1x1x128xf32>
    %26 = vector.shape_cast %25 : vector<1x1x128xf32> to vector<1x128xf32>
    %27 = vector.shape_cast %24 : vector<1x128xf32> to vector<1x1x128xf32>
    tpu.vector_store %arg4[%c0_23, %c0_24, %c0_25], %27 {strides = array<i32>} : memref<1x2x128xf32, #tpu.memory_space<vmem>>, vector<1x1x128xf32>,
    %28 = arith.mulf %18, %18 : vector<16x128xf32>
    %cst_26 = arith.constant dense<0.000000e+00> : vector<128xf32>
    %29 = vector.multi_reduction <add>, %28, %cst_26 [0] : vector<16x128xf32> to vector<128xf32>
    %30 = vector.shape_cast %29 : vector<128xf32> to vector<1x128xf32>
    %c0_27 = arith.constant 0 : index
    %c1_28 = arith.constant 1 : index
    %c0_29 = arith.constant 0 : index
    %31 = vector.load %arg4[%c0_27, %c1_28, %c0_29] : memref<1x2x128xf32, #tpu.memory_space<vmem>>, vector<1x1x128xf32>
    %32 = vector.shape_cast %31 : vector<1x1x128xf32> to vector<1x128xf32>
    %33 = vector.shape_cast %30 : vector<1x128xf32> to vector<1x1x128xf32>
    tpu.vector_store %arg4[%c0_27, %c1_28, %c0_29], %33 {strides = array<i32>} : memref<1x2x128xf32, #tpu.memory_space<vmem>>, vector<1x1x128xf32>,
    return
  }
  func.func @transform_0(%arg0: i32) -> (i32, i32, i32) {
    %c0_i32 = arith.constant 0 : i32
    %c0_i32_0 = arith.constant 0 : i32
    %c0_i32_1 = arith.constant 0 : i32
    return %arg0, %c0_i32, %c0_i32_0 : i32, i32, i32
  }
  func.func @transform_1(%arg0: i32) -> (i32, i32, i32) {
    %c0_i32 = arith.constant 0 : i32
    %c0_i32_0 = arith.constant 0 : i32
    %c0_i32_1 = arith.constant 0 : i32
    %c0_i32_2 = arith.constant 0 : i32
    return %c0_i32, %c0_i32_0, %c0_i32_1 : i32, i32, i32
  }
  func.func @transform_2(%arg0: i32) -> (i32, i32, i32) {
    %c0_i32 = arith.constant 0 : i32
    %c0_i32_0 = arith.constant 0 : i32
    %c0_i32_1 = arith.constant 0 : i32
    return %arg0, %c0_i32, %c0_i32_0 : i32, i32, i32
  }
  func.func @transform_3(%arg0: i32) -> (i32, i32, i32) {
    %c0_i32 = arith.constant 0 : i32
    %c0_i32_0 = arith.constant 0 : i32
    %c0_i32_1 = arith.constant 0 : i32
    return %arg0, %c0_i32, %c0_i32_0 : i32, i32, i32
  }
}

module attributes {stable_mosaic.version = 11 : i64} {
  func.func @_conv_stats_kernel(%arg0: i32, %arg1: memref<1x18x128xf32, #tpu.memory_space<vmem>>, %arg2: memref<1x128xf32, #tpu.memory_space<vmem>>, %arg3: memref<1x128xf32, #tpu.memory_space<vmem>>, %arg4: memref<3x128x128xf32, #tpu.memory_space<vmem>>, %arg5: memref<1x16x128xf32, #tpu.memory_space<vmem>>, %arg6: memref<1x2x128xf32, #tpu.memory_space<vmem>>) attributes {dimension_semantics = [#tpu.dimension_semantics<parallel>], iteration_bounds = array<i64: 2>, scalar_prefetch = 0 : i64, scratch_operands = 0 : i64, tpu.core_type = #tpu.core_type<tc>, window_params = [{transform_indices = @transform_0, window_bounds = array<i64: 1, 18, 128>}, {pipeline_mode = #tpu.pipeline_mode<synchronous>, transform_indices = @transform_1, window_bounds = array<i64: 1, 128>}, {pipeline_mode = #tpu.pipeline_mode<synchronous>, transform_indices = @transform_2, window_bounds = array<i64: 1, 128>}, {pipeline_mode = #tpu.pipeline_mode<synchronous>, transform_indices = @transform_3, window_bounds = array<i64: 3, 128, 128>}, {transform_indices = @transform_4, window_bounds = array<i64: 1, 16, 128>}, {transform_indices = @transform_5, window_bounds = array<i64: 1, 2, 128>}]} {
    %c0 = arith.constant 0 : index
    %c0_0 = arith.constant 0 : index
    %c0_1 = arith.constant 0 : index
    %0 = vector.load %arg1[%c0, %c0_0, %c0_1] : memref<1x18x128xf32, #tpu.memory_space<vmem>>, vector<1x18x128xf32>
    %1 = vector.shape_cast %0 : vector<1x18x128xf32> to vector<18x128xf32>
    %c0_2 = arith.constant 0 : index
    %c0_3 = arith.constant 0 : index
    %2 = vector.load %arg2[%c0_2, %c0_3] : memref<1x128xf32, #tpu.memory_space<vmem>>, vector<1x128xf32>
    %3 = vector.broadcast %2 : vector<1x128xf32> to vector<18x128xf32>
    %4 = arith.mulf %1, %3 : vector<18x128xf32>
    %c0_4 = arith.constant 0 : index
    %c0_5 = arith.constant 0 : index
    %5 = vector.load %arg3[%c0_4, %c0_5] : memref<1x128xf32, #tpu.memory_space<vmem>>, vector<1x128xf32>
    %6 = vector.broadcast %5 : vector<1x128xf32> to vector<18x128xf32>
    %7 = arith.addf %4, %6 : vector<18x128xf32>
    %cst = arith.constant 0.000000e+00 : f32
    %8 = vector.broadcast %cst : f32 to vector<18x128xf32>
    %9 = arith.maximumf %7, %8 : vector<18x128xf32>
    %10 = tpu.iota {dimensions = array<i32: 0>} : vector<18x1xi32>
    %c1_i32 = arith.constant 1 : i32
    %11 = vector.broadcast %c1_i32 : i32 to vector<18x1xi32>
    %12 = arith.cmpi sge, %10, %11 : vector<18x1xi32>
    %c16_i32 = arith.constant 16 : i32
    %13 = vector.broadcast %c16_i32 : i32 to vector<18x1xi32>
    %14 = arith.cmpi sle, %10, %13 : vector<18x1xi32>
    %15 = arith.andi %12, %14 : vector<18x1xi1>
    %cst_6 = arith.constant 0.000000e+00 : f32
    %16 = vector.shape_cast %15 : vector<18x1xi1> to vector<18x1xi1>
    %17 = vector.broadcast %16 : vector<18x1xi1> to vector<18x128xi1>
    %18 = vector.broadcast %cst_6 : f32 to vector<18x128xf32>
    %19 = arith.select %17, %9, %18 : vector<18x128xi1>, vector<18x128xf32>
    %20 = vector.extract_strided_slice %19 {offsets = [0, 0], sizes = [16, 128], strides = [1, 1]} : vector<18x128xf32> to vector<16x128xf32>
    %21 = vector.extract_strided_slice %19 {offsets = [1, 0], sizes = [16, 128], strides = [1, 1]} : vector<18x128xf32> to vector<16x128xf32>
    %22 = vector.extract_strided_slice %19 {offsets = [2, 0], sizes = [16, 128], strides = [1, 1]} : vector<18x128xf32> to vector<16x128xf32>
    %cst_7 = arith.constant 0.000000e+00 : f32
    %23 = vector.broadcast %cst_7 : f32 to vector<16x128xf32>
    %c0_8 = arith.constant 0 : index
    %c0_9 = arith.constant 0 : index
    %c0_10 = arith.constant 0 : index
    %24 = vector.load %arg4[%c0_8, %c0_9, %c0_10] : memref<3x128x128xf32, #tpu.memory_space<vmem>>, vector<1x128x128xf32>
    %25 = vector.shape_cast %24 : vector<1x128x128xf32> to vector<128x128xf32>
    %cst_11 = arith.constant dense<0.000000e+00> : vector<16x128xf32>
    %26 = tpu.matmul %20, %25, %cst_11 {dimension_numbers = #tpu.dot_dimension_numbers<[1], [0], [0], [1], [0, 0, 1, 1], [], []>} : vector<16x128xf32>, vector<128x128xf32>, vector<16x128xf32> -> vector<16x128xf32>
    %27 = arith.addf %23, %26 : vector<16x128xf32>
    %c1 = arith.constant 1 : index
    %c0_12 = arith.constant 0 : index
    %c0_13 = arith.constant 0 : index
    %28 = vector.load %arg4[%c1, %c0_12, %c0_13] : memref<3x128x128xf32, #tpu.memory_space<vmem>>, vector<1x128x128xf32>
    %29 = vector.shape_cast %28 : vector<1x128x128xf32> to vector<128x128xf32>
    %cst_14 = arith.constant dense<0.000000e+00> : vector<16x128xf32>
    %30 = tpu.matmul %21, %29, %cst_14 {dimension_numbers = #tpu.dot_dimension_numbers<[1], [0], [0], [1], [0, 0, 1, 1], [], []>} : vector<16x128xf32>, vector<128x128xf32>, vector<16x128xf32> -> vector<16x128xf32>
    %31 = arith.addf %27, %30 : vector<16x128xf32>
    %c2 = arith.constant 2 : index
    %c0_15 = arith.constant 0 : index
    %c0_16 = arith.constant 0 : index
    %32 = vector.load %arg4[%c2, %c0_15, %c0_16] : memref<3x128x128xf32, #tpu.memory_space<vmem>>, vector<1x128x128xf32>
    %33 = vector.shape_cast %32 : vector<1x128x128xf32> to vector<128x128xf32>
    %cst_17 = arith.constant dense<0.000000e+00> : vector<16x128xf32>
    %34 = tpu.matmul %22, %33, %cst_17 {dimension_numbers = #tpu.dot_dimension_numbers<[1], [0], [0], [1], [0, 0, 1, 1], [], []>} : vector<16x128xf32>, vector<128x128xf32>, vector<16x128xf32> -> vector<16x128xf32>
    %35 = arith.addf %31, %34 : vector<16x128xf32>
    %36 = vector.shape_cast %35 : vector<16x128xf32> to vector<1x16x128xf32>
    %c0_18 = arith.constant 0 : index
    %c0_19 = arith.constant 0 : index
    %c0_20 = arith.constant 0 : index
    %37 = vector.load %arg5[%c0_18, %c0_19, %c0_20] : memref<1x16x128xf32, #tpu.memory_space<vmem>>, vector<1x16x128xf32>
    tpu.vector_store %arg5[%c0_18, %c0_19, %c0_20], %36 {strides = array<i32>} : memref<1x16x128xf32, #tpu.memory_space<vmem>>, vector<1x16x128xf32>,
    %cst_21 = arith.constant dense<0.000000e+00> : vector<128xf32>
    %38 = vector.multi_reduction <add>, %35, %cst_21 [0] : vector<16x128xf32> to vector<128xf32>
    %39 = vector.shape_cast %38 : vector<128xf32> to vector<1x128xf32>
    %c0_22 = arith.constant 0 : index
    %c0_23 = arith.constant 0 : index
    %c0_24 = arith.constant 0 : index
    %40 = vector.load %arg6[%c0_22, %c0_23, %c0_24] : memref<1x2x128xf32, #tpu.memory_space<vmem>>, vector<1x1x128xf32>
    %41 = vector.shape_cast %40 : vector<1x1x128xf32> to vector<1x128xf32>
    %42 = vector.shape_cast %39 : vector<1x128xf32> to vector<1x1x128xf32>
    tpu.vector_store %arg6[%c0_22, %c0_23, %c0_24], %42 {strides = array<i32>} : memref<1x2x128xf32, #tpu.memory_space<vmem>>, vector<1x1x128xf32>,
    %43 = arith.mulf %35, %35 : vector<16x128xf32>
    %cst_25 = arith.constant dense<0.000000e+00> : vector<128xf32>
    %44 = vector.multi_reduction <add>, %43, %cst_25 [0] : vector<16x128xf32> to vector<128xf32>
    %45 = vector.shape_cast %44 : vector<128xf32> to vector<1x128xf32>
    %c0_26 = arith.constant 0 : index
    %c1_27 = arith.constant 1 : index
    %c0_28 = arith.constant 0 : index
    %46 = vector.load %arg6[%c0_26, %c1_27, %c0_28] : memref<1x2x128xf32, #tpu.memory_space<vmem>>, vector<1x1x128xf32>
    %47 = vector.shape_cast %46 : vector<1x1x128xf32> to vector<1x128xf32>
    %48 = vector.shape_cast %45 : vector<1x128xf32> to vector<1x1x128xf32>
    tpu.vector_store %arg6[%c0_26, %c1_27, %c0_28], %48 {strides = array<i32>} : memref<1x2x128xf32, #tpu.memory_space<vmem>>, vector<1x1x128xf32>,
    return
  }
  func.func @transform_0(%arg0: i32) -> (i32, i32, i32) {
    %c0_i32 = arith.constant 0 : i32
    %c0_i32_0 = arith.constant 0 : i32
    %c0_i32_1 = arith.constant 0 : i32
    return %arg0, %c0_i32, %c0_i32_0 : i32, i32, i32
  }
  func.func @transform_1(%arg0: i32) -> (i32, i32) {
    %c0_i32 = arith.constant 0 : i32
    %c0_i32_0 = arith.constant 0 : i32
    %c0_i32_1 = arith.constant 0 : i32
    return %c0_i32, %c0_i32_0 : i32, i32
  }
  func.func @transform_2(%arg0: i32) -> (i32, i32) {
    %c0_i32 = arith.constant 0 : i32
    %c0_i32_0 = arith.constant 0 : i32
    %c0_i32_1 = arith.constant 0 : i32
    return %c0_i32, %c0_i32_0 : i32, i32
  }
  func.func @transform_3(%arg0: i32) -> (i32, i32, i32) {
    %c0_i32 = arith.constant 0 : i32
    %c0_i32_0 = arith.constant 0 : i32
    %c0_i32_1 = arith.constant 0 : i32
    %c0_i32_2 = arith.constant 0 : i32
    return %c0_i32, %c0_i32_0, %c0_i32_1 : i32, i32, i32
  }
  func.func @transform_4(%arg0: i32) -> (i32, i32, i32) {
    %c0_i32 = arith.constant 0 : i32
    %c0_i32_0 = arith.constant 0 : i32
    %c0_i32_1 = arith.constant 0 : i32
    return %arg0, %c0_i32, %c0_i32_0 : i32, i32, i32
  }
  func.func @transform_5(%arg0: i32) -> (i32, i32, i32) {
    %c0_i32 = arith.constant 0 : i32
    %c0_i32_0 = arith.constant 0 : i32
    %c0_i32_1 = arith.constant 0 : i32
    return %arg0, %c0_i32, %c0_i32_0 : i32, i32, i32
  }
}

module attributes {stable_mosaic.version = 11 : i64} {
  func.func @_bn_relu_kernel(%arg0: i32, %arg1: memref<1x16x128xf32, #tpu.memory_space<vmem>>, %arg2: memref<1x128xf32, #tpu.memory_space<vmem>>, %arg3: memref<1x128xf32, #tpu.memory_space<vmem>>, %arg4: memref<1x16x128xf32, #tpu.memory_space<vmem>>) attributes {dimension_semantics = [#tpu.dimension_semantics<parallel>], iteration_bounds = array<i64: 2>, scalar_prefetch = 0 : i64, scratch_operands = 0 : i64, tpu.core_type = #tpu.core_type<tc>, window_params = [{transform_indices = @transform_0, window_bounds = array<i64: 1, 16, 128>}, {pipeline_mode = #tpu.pipeline_mode<synchronous>, transform_indices = @transform_1, window_bounds = array<i64: 1, 128>}, {pipeline_mode = #tpu.pipeline_mode<synchronous>, transform_indices = @transform_2, window_bounds = array<i64: 1, 128>}, {transform_indices = @transform_3, window_bounds = array<i64: 1, 16, 128>}]} {
    %c0 = arith.constant 0 : index
    %c0_0 = arith.constant 0 : index
    %c0_1 = arith.constant 0 : index
    %0 = vector.load %arg1[%c0, %c0_0, %c0_1] : memref<1x16x128xf32, #tpu.memory_space<vmem>>, vector<1x16x128xf32>
    %c0_2 = arith.constant 0 : index
    %c0_3 = arith.constant 0 : index
    %1 = vector.load %arg2[%c0_2, %c0_3] : memref<1x128xf32, #tpu.memory_space<vmem>>, vector<1x128xf32>
    %2 = vector.shape_cast %1 : vector<1x128xf32> to vector<1x1x128xf32>
    %3 = vector.broadcast %2 : vector<1x1x128xf32> to vector<1x16x128xf32>
    %4 = arith.mulf %0, %3 : vector<1x16x128xf32>
    %c0_4 = arith.constant 0 : index
    %c0_5 = arith.constant 0 : index
    %5 = vector.load %arg3[%c0_4, %c0_5] : memref<1x128xf32, #tpu.memory_space<vmem>>, vector<1x128xf32>
    %6 = vector.shape_cast %5 : vector<1x128xf32> to vector<1x1x128xf32>
    %7 = vector.broadcast %6 : vector<1x1x128xf32> to vector<1x16x128xf32>
    %8 = arith.addf %4, %7 : vector<1x16x128xf32>
    %cst = arith.constant 0.000000e+00 : f32
    %9 = vector.broadcast %cst : f32 to vector<1x16x128xf32>
    %10 = arith.maximumf %8, %9 : vector<1x16x128xf32>
    %c0_6 = arith.constant 0 : index
    %c0_7 = arith.constant 0 : index
    %c0_8 = arith.constant 0 : index
    %11 = vector.load %arg4[%c0_6, %c0_7, %c0_8] : memref<1x16x128xf32, #tpu.memory_space<vmem>>, vector<1x16x128xf32>
    tpu.vector_store %arg4[%c0_6, %c0_7, %c0_8], %10 {strides = array<i32>} : memref<1x16x128xf32, #tpu.memory_space<vmem>>, vector<1x16x128xf32>,
    return
  }
  func.func @transform_0(%arg0: i32) -> (i32, i32, i32) {
    %c0_i32 = arith.constant 0 : i32
    %c0_i32_0 = arith.constant 0 : i32
    %c0_i32_1 = arith.constant 0 : i32
    return %arg0, %c0_i32, %c0_i32_0 : i32, i32, i32
  }
  func.func @transform_1(%arg0: i32) -> (i32, i32) {
    %c0_i32 = arith.constant 0 : i32
    %c0_i32_0 = arith.constant 0 : i32
    %c0_i32_1 = arith.constant 0 : i32
    return %c0_i32, %c0_i32_0 : i32, i32
  }
  func.func @transform_2(%arg0: i32) -> (i32, i32) {
    %c0_i32 = arith.constant 0 : i32
    %c0_i32_0 = arith.constant 0 : i32
    %c0_i32_1 = arith.constant 0 : i32
    return %c0_i32, %c0_i32_0 : i32, i32
  }
  func.func @transform_3(%arg0: i32) -> (i32, i32, i32) {
    %c0_i32 = arith.constant 0 : i32
    %c0_i32_0 = arith.constant 0 : i32
    %c0_i32_1 = arith.constant 0 : i32
    return %arg0, %c0_i32, %c0_i32_0 : i32, i32, i32
  }
}

</mosaic_0001>

<llo_original>
// kernel: tile.23
$region0: #{tile.23}
  #allocation0 [shape = 's32[1]{0}', space=sflag, size = 0x4, scoped, tag = 'scoped memory for tile.23']
  %s0 = inlined_call_operand.vmem [shape: f32[8], index: 0, kind: input, shape index: {}]
  %s1 = inlined_call_operand.vmem [shape: f32[16,8], index: 1, kind: output, shape index: {}]
  // Predicated region
  $region2: #{tile.23} parent=0 // pred_check
    _
  $region3: #{tile.23} parent=0 // pred_check_branch
    %3 = sbr.rel (0) target = $region5
  $region4: #{tile.23} parent=0 // pred_region
    _
  $region5: #{tile.23} parent=0 // pred_fallthru
    _
  %v4 = vld [vmem:[%s0] ss:$0 sm:$0xff]
  %5 = vst [vmem:[%s1] sm:$0xff] %v4
  %s6 = scalar_lea.vmem %s1, 8
  %7 = vst [vmem:[%s6] sm:$0xff] %v4

// kernel: tile.24
$region0: #{tile.24}
  %s0 = inlined_call_operand.vmem [shape: f32[16,8], index: 0, kind: input, shape index: {}]
  %s1 = inlined_call_operand.vmem [shape: f32[1,128], index: 1, kind: output, shape index: {}]
  $region1: #{tile.24} parent=0
    #allocation0 [shape = 'u8[4096]{0}', space=vmem, size = 0x1000, scoped, tag = 'scoped mem for output reshape']
    %v2 = vld [vmem:[%s0] sm:$0x1]
    %vm3 = vcmask 64512
    %4 = vst.msk [vmem:[#allocation0] sm:$0x1] %vm3, %v2
    %s5 = scalar_lea.vmem %s0, 15
    %v6 = vld [vmem:[%s5] sm:$0x1]
    %7 = vrot.lane.b32.xlu0 %v6, 120
    %v8 = vpop.permute.xlu0 %7
    %vm9 = vcmask 1048512
    %10 = vst.msk [vmem:[#allocation0] sm:$0x1] %vm9, %v8
    %s11 = scalar_lea.vmem %s0, 14
    %v12 = vld [vmem:[%s11] sm:$0x1]
    %13 = vrot.lane.b32.xlu0 %v12, 112
    %v14 = vpop.permute.xlu0 %13
    %vm15 = vcmask 982912
    %16 = vst.msk [vmem:[#allocation0] sm:$0x1] %vm15, %v14
    %s17 = scalar_lea.vmem %s0, 13
    %v18 = vld [vmem:[%s17] sm:$0x1]
    %19 = vrot.lane.b32.xlu0 %v18, 104
    %v20 = vpop.permute.xlu0 %19
    %vm21 = vcmask 917312
    %22 = vst.msk [vmem:[#allocation0] sm:$0x1] %vm21, %v20
    %s23 = scalar_lea.vmem %s0, 12
    %v24 = vld [vmem:[%s23] sm:$0x1]
    %25 = vrot.lane.b32.xlu0 %v24, 96
    %v26 = vpop.permute.xlu0 %25
    %vm27 = vcmask 851712
    %28 = vst.msk [vmem:[#allocation0] sm:$0x1] %vm27, %v26
    %s29 = scalar_lea.vmem %s0, 11
    %v30 = vld [vmem:[%s29] sm:$0x1]
    %31 = vrot.lane.b32.xlu0 %v30, 88
    %v32 = vpop.permute.xlu0 %31
    %vm33 = vcmask 786112
    %34 = vst.msk [vmem:[#allocation0] sm:$0x1] %vm33, %v32
    %s35 = scalar_lea.vmem %s0, 10
    %v36 = vld [vmem:[%s35] sm:$0x1]
    %37 = vrot.lane.b32.xlu0 %v36, 80
    %v38 = vpop.permute.xlu0 %37
    %vm39 = vcmask 720512
    %40 = vst.msk [vmem:[#allocation0] sm:$0x1] %vm39, %v38
    %s41 = scalar_lea.vmem %s0, 9
    %v42 = vld [vmem:[%s41] sm:$0x1]
    %43 = vrot.lane.b32.xlu0 %v42, 72
    %v44 = vpop.permute.xlu0 %43
    %vm45 = vcmask 654912
    %46 = vst.msk [vmem:[#allocation0] sm:$0x1] %vm45, %v44
    %s47 = scalar_lea.vmem %s0, 8
    %v48 = vld [vmem:[%s47] sm:$0x1]
    %49 = vrot.lane.b32.xlu0 %v48, 64
    %v50 = vpop.permute.xlu0 %49
    %vm51 = vcmask 589312
    %52 = vst.msk [vmem:[#allocation0] sm:$0x1] %vm51, %v50
    %s53 = scalar_lea.vmem %s0, 7
    %v54 = vld [vmem:[%s53] sm:$0x1]
    %55 = vrot.lane.b32.xlu0 %v54, 56
    %v56 = vpop.permute.xlu0 %55
    %vm57 = vcmask 523712
    %58 = vst.msk [vmem:[#allocation0] sm:$0x1] %vm57, %v56
    %s59 = scalar_lea.vmem %s0, 6
    %v60 = vld [vmem:[%s59] sm:$0x1]
    %61 = vrot.lane.b32.xlu0 %v60, 48
    %v62 = vpop.permute.xlu0 %61
    %vm63 = vcmask 458112
    %64 = vst.msk [vmem:[#allocation0] sm:$0x1] %vm63, %v62
    %s65 = scalar_lea.vmem %s0, 5
    %v66 = vld [vmem:[%s65] sm:$0x1]
    %67 = vrot.lane.b32.xlu0 %v66, 40
    %v68 = vpop.permute.xlu0 %67
    %vm69 = vcmask 392512
    %70 = vst.msk [vmem:[#allocation0] sm:$0x1] %vm69, %v68
    %s71 = scalar_lea.vmem %s0, 4
    %v72 = vld [vmem:[%s71] sm:$0x1]
    %73 = vrot.lane.b32.xlu0 %v72, 32
    %v74 = vpop.permute.xlu0 %73
    %vm75 = vcmask 326912
    %76 = vst.msk [vmem:[#allocation0] sm:$0x1] %vm75, %v74
    %s77 = scalar_lea.vmem %s0, 3
    %v78 = vld [vmem:[%s77] sm:$0x1]
    %79 = vrot.lane.b32.xlu0 %v78, 24
    %v80 = vpop.permute.xlu0 %79
    %vm81 = vcmask 261312
    %82 = vst.msk [vmem:[#allocation0] sm:$0x1] %vm81, %v80
    %s83 = scalar_lea.vmem %s0, 2
    %v84 = vld [vmem:[%s83] sm:$0x1]
    %85 = vrot.lane.b32.xlu0 %v84, 16
    %v86 = vpop.permute.xlu0 %85
    %vm87 = vcmask 195712
    %88 = vst.msk [vmem:[#allocation0] sm:$0x1] %vm87, %v86
    %s89 = scalar_lea.vmem %s0, 1
    %v90 = vld [vmem:[%s89] sm:$0x1]
    %91 = vrot.lane.b32.xlu0 %v90, 8
    %v92 = vpop.permute.xlu0 %91
    %vm93 = vcmask 130112
    %94 = vst.msk [vmem:[#allocation0] sm:$0x1] %vm93, %v92
    %s96 = ssub.s32 2, 1
    %v97 = vld [vmem:[#allocation0] sm:%s96]
    %s99 = ssub.s32 2, 1
    %100 = vst [vmem:[%s1] sm:%s99] %v97

// kernel: double_conv2d.3
$region0: #{double_conv2d.3}
  #allocation0 [shape = 'u32[]', space=smem, size = 0x4, offset = 0x4, fixed_abs, tag = 'smem constant byte address 0x4 - core index']
  #allocation1 [shape = 'u32[72,128]{1,0:T(1,128)}', space=vmem, size = 0x9000, scoped, tag = 'internal scratch']
  %s0 = inlined_call_operand.vmem [shape: f32[2,18,64], index: 0, kind: input, shape index: {}]
  %s1 = inlined_call_operand.vmem [shape: f32[3,64,128], index: 1, kind: input, shape index: {}]
  %s2 = inlined_call_operand.vmem [shape: f32[2,18,128], index: 2, kind: output, shape index: {0}]
  %s3 = inlined_call_operand.vmem [shape: f32[2,2,128], index: 3, kind: output, shape index: {1}]
  %4 = xla_tuple %s2, %s3
  %s5 = sld [smem:[#allocation0]]
  $region49: #{double_conv2d.3} parent=0
    _
  %s7 = ssub.s32 1, %s5
  %s8 = scalar_select 0, %s7, %s5
  loop: start=0, step=1, limit=4
  $region2: #{double_conv2d.3} parent=0 // loop_pre_header
    _
  $region3: #{double_conv2d.3} parent=0 // loop_header
    %s10 = sphi 0, %s14
    %p11 = scmp.ge.s32.totalorder %s10, 4
    %s20 = sphi 0, %s22
    %s23 = sphi 0, %s20
    %s24 = sphi 0, %s23
    %s40 = sphi 0, %s24
    %s44 = sphi 0, %s44
    %s46 = sphi 0, %s44
    %s47 = sphi 0, %s46
    %s61 = sphi 0, %s47
    %s67 = sphi 0, %s69
    %s70 = sphi 0, %s67
    %s71 = sphi 0, %s70
    %s87 = sphi 0, %s71
    %s93 = sphi 0, %s95
    %s96 = sphi 0, %s93
    %s97 = sphi 0, %s96
    %s113 = sphi 0, %s97
  $region4: #{double_conv2d.3} parent=0 // loop_header_branch
    %13 = sbr.rel (%p11) target = $region8
  $region5: #{double_conv2d.3} parent=0 // loop_body
    %s15 = ssub.s32 %s10, 1
    %s16 = ssub.s32 %s10, 2
    %s17 = sadd.s32 %s10, 1
    %s18 = ssub.s32 %s10, %s17
    %p19 = scmp.eq.s32.totalorder %s18, 0
    %s21 = sadd.s32 %s20, 1
    %s22 = scalar_select %p19, %s20, %s21
    %p25 = pneg %p19
    %p26 = scmp.eq.s32.totalorder %s10, 1
    %p27 = por %p25, %p26
    %p28 = scmp.ne.s32.totalorder %s20, %s23
    %p29 = scmp.eq.s32.totalorder %s10, 0
    %p30 = por %p28, %p29
    %p31 = scmp.ne.s32.totalorder %s20, %s23
    %p32 = scmp.eq.s32.totalorder %s15, 1
    %p33 = por %p31, %p32
    %p34 = scmp.ne.s32.totalorder %s23, %s24
    %p35 = scmp.eq.s32.totalorder %s15, 0
    %p36 = por %p34, %p35
    %p37 = scmp.ne.s32.totalorder %s23, %s24
    %p38 = scmp.eq.s32.totalorder %s16, 1
    %p39 = por %p37, %p38
    %p41 = scmp.ne.s32.totalorder %s24, %s40
    %p42 = scmp.eq.s32.totalorder %s16, 0
    %p43 = por %p41, %p42
    %s45 = sadd.s32 %s44, 1
    %p48 = scmp.eq.s32.totalorder %s10, 1
    %p49 = scmp.ne.s32.totalorder %s44, %s46
    %p50 = scmp.eq.s32.totalorder %s10, 0
    %p51 = por %p49, %p50
    %p52 = scmp.ne.s32.totalorder %s44, %s46
    %p53 = scmp.eq.s32.totalorder %s15, 1
    %p54 = por %p52, %p53
    %p55 = scmp.ne.s32.totalorder %s46, %s47
    %p56 = scmp.eq.s32.totalorder %s15, 0
    %p57 = por %p55, %p56
    %p58 = scmp.ne.s32.totalorder %s46, %s47
    %p59 = scmp.eq.s32.totalorder %s16, 1
    %p60 = por %p58, %p59
    %p62 = scmp.ne.s32.totalorder %s47, %s61
    %p63 = scmp.eq.s32.totalorder %s16, 0
    %p64 = por %p62, %p63
    %s65 = ssub.s32 %s10, %s17
    %p66 = scmp.eq.s32.totalorder %s65, 0
    %s68 = sadd.s32 %s67, 1
    %s69 = scalar_select %p66, %s67, %s68
    %p72 = pneg %p66
    %p73 = scmp.eq.s32.totalorder %s10, 1
    %p74 = por %p72, %p73
    %p75 = scmp.ne.s32.totalorder %s67, %s70
    %p76 = scmp.eq.s32.totalorder %s10, 0
    %p77 = por %p75, %p76
    %p78 = scmp.ne.s32.totalorder %s67, %s70
    %p79 = scmp.eq.s32.totalorder %s15, 1
    %p80 = por %p78, %p79
    %p81 = scmp.ne.s32.totalorder %s70, %s71
    %p82 = scmp.eq.s32.totalorder %s15, 0
    %p83 = por %p81, %p82
    %p84 = scmp.ne.s32.totalorder %s70, %s71
    %p85 = scmp.eq.s32.totalorder %s16, 1
    %p86 = por %p84, %p85
    %p88 = scmp.ne.s32.totalorder %s71, %s87
    %p89 = scmp.eq.s32.totalorder %s16, 0
    %p90 = por %p88, %p89
    %s91 = ssub.s32 %s10, %s17
    %p92 = scmp.eq.s32.totalorder %s91, 0
    %s94 = sadd.s32 %s93, 1
    %s95 = scalar_select %p92, %s93, %s94
    %p98 = pneg %p92
    %p99 = scmp.eq.s32.totalorder %s10, 1
    %p100 = por %p98, %p99
    %p101 = scmp.ne.s32.totalorder %s93, %s96
    %p102 = scmp.eq.s32.totalorder %s10, 0
    %p103 = por %p101, %p102
    %p104 = scmp.ne.s32.totalorder %s93, %s96
    %p105 = scmp.eq.s32.totalorder %s15, 1
    %p106 = por %p104, %p105
    %p107 = scmp.ne.s32.totalorder %s96, %s97
    %p108 = scmp.eq.s32.totalorder %s15, 0
    %p109 = por %p107, %p108
    %p110 = scmp.ne.s32.totalorder %s96, %s97
    %p111 = scmp.eq.s32.totalorder %s16, 1
    %p112 = por %p110, %p111
    %p114 = scmp.ne.s32.totalorder %s97, %s113
    %p115 = scmp.eq.s32.totalorder %s16, 0
    %p116 = por %p114, %p115
    %p117 = scmp.le.s32.totalorder 1, %s10
    %p118 = scmp.lt.s32.totalorder %s10, 3
    %p119 = pnand %p117, %p118
    %p120 = pneg %p119
    // Predicated region
    $region9: #{double_conv2d.3} parent=5 // pred_check
      _
    $region10: #{double_conv2d.3} parent=5 // pred_check_branch
      %122 = sbr.rel (%p119) target = $region12
    $region11: #{double_conv2d.3} parent=5 // pred_region
      %s123 = ssub.s32 %s10, 1
      // Predicated region
      $region13: #{double_conv2d.3} parent=11 // pred_check
        %p124 = pneg %p57
      $region14: #{double_conv2d.3} parent=11 // pred_check_branch
        %126 = sbr.rel (%p124) target = $region16
      $region15: #{double_conv2d.3} parent=11 // pred_region
        _
      $region16: #{double_conv2d.3} parent=11 // pred_fallthru
        _
    $region12: #{double_conv2d.3} parent=5 // pred_fallthru
      _
    %p127 = scmp.lt.s32.totalorder %s10, 2
    // Predicated region
    $region17: #{double_conv2d.3} parent=5 // pred_check
      %p128 = pneg %p127
    $region18: #{double_conv2d.3} parent=5 // pred_check_branch
      %130 = sbr.rel (%p128) target = $region20
    $region19: #{double_conv2d.3} parent=5 // pred_region
      // Predicated region
      $region21: #{double_conv2d.3} parent=19 // pred_check
        %p131 = pneg %p30
      $region22: #{double_conv2d.3} parent=19 // pred_check_branch
        %133 = sbr.rel (%p131) target = $region24
      $region23: #{double_conv2d.3} parent=19 // pred_region
        %p134 = scmp.lt.s32.totalorder %s10, 1
        %s135 = scalar_select %p134, %s10, 1
        %s136 = smul.addr %s135, 3
        %s137 = smul.addr %s136, 8
        %s138 = scalar_lea.vmem %s0, %s137
      $region24: #{double_conv2d.3} parent=19 // pred_fallthru
        _
    $region20: #{double_conv2d.3} parent=5 // pred_fallthru
      _
    %p139 = scmp.le.s32.totalorder 1, %s10
    %p140 = scmp.lt.s32.totalorder %s10, 3
    %p141 = pnand %p139, %p140
    %p142 = pneg %p141
    // Predicated region
    $region25: #{double_conv2d.3} parent=5 // pred_check
      _
    $region26: #{double_conv2d.3} parent=5 // pred_check_branch
      %144 = sbr.rel (%p141) target = $region28
    $region27: #{double_conv2d.3} parent=5 // pred_region
      %s145 = ssub.s32 %s10, 1
      %p146 = scmp.lt.s32.totalorder %s15, 1
      %s147 = scalar_select %p146, %s15, 1
      %s148 = smul.addr %s147, 3
      %s149 = smul.addr %s148, 8
      %s150 = scalar_lea.vmem %s0, %s149
      %p151 = pneg %p36
      %p152 = pneg %p33
      %p153 = pneg %p57
      %p154 = pneg %p54
      %p155 = pneg %p83
      %p156 = pneg %p80
      %p157 = scmp.lt.s32.totalorder %s15, 1
      %s158 = scalar_select %p157, %s15, 1
      %s159 = smul.addr %s158, 3
      %s160 = smul.addr %s159, 8
      %s161 = scalar_lea.vmem %s2, %s160
      %p162 = pneg %p109
      %p163 = pneg %p106
      %p164 = scmp.lt.s32.totalorder %s15, 1
      %s165 = scalar_select %p164, %s15, 1
      %s166 = smul.addr %s165, 2
      %s167 = scalar_lea.vmem %s3, %s166
      %p168 = scmp.lt.s32.totalorder %s15, 1
      %s169 = scalar_select %p168, %s15, 1
      %s170 = smul.addr %s169, 3
      %s171 = smul.addr %s170, 8
      %s172 = scalar_lea.vmem %s0, %s171
      %p173 = scmp.lt.s32.totalorder %s15, 1
      %s174 = scalar_select %p173, %s15, 1
      %s175 = smul.addr %s174, 3
      %s176 = smul.addr %s175, 8
      %s177 = scalar_lea.vmem %s2, %s176
      %p178 = scmp.lt.s32.totalorder %s15, 1
      %s179 = scalar_select %p178, %s15, 1
      %s180 = smul.addr %s179, 2
      %s181 = scalar_lea.vmem %s3, %s180
      %v182 = vld [vmem:[%s172] sm:$0xff]
      %v183 = vld [vmem:[%s172 + $0x8] sm:$0xff]
      %v184 = vld [vmem:[%s172 + $0x1] sm:$0xff]
      %v185 = vld [vmem:[%s172 + $0x9] sm:$0xff]
      %v186 = vld [vmem:[%s172 + $0x2] sm:$0xff]
      %v187 = vld [vmem:[%s172 + $0xa] sm:$0xff]
      %v188 = vld [vmem:[%s1] sm:$0xff]
      %v189 = vld [vmem:[%s1 + $0x8] sm:$0xff]
      %v190 = vld [vmem:[%s1 + $0x10] sm:$0xff]
      %v191 = vld [vmem:[%s1 + $0x18] sm:$0xff]
      %v192 = vld [vmem:[%s1 + $0x20] sm:$0xff]
      %v193 = vld [vmem:[%s1 + $0x28] sm:$0xff]
      %v194 = vld [vmem:[%s1 + $0x30] sm:$0xff]
      %v195 = vld [vmem:[%s1 + $0x38] sm:$0xff]
      %s196 = scalar_lea.vmem %s1, 64
      %v197 = vld [vmem:[%s196] sm:$0xff]
      %v198 = vld [vmem:[%s196 + $0x8] sm:$0xff]
      %v199 = vld [vmem:[%s196 + $0x10] sm:$0xff]
      %v200 = vld [vmem:[%s196 + $0x18] sm:$0xff]
      %v201 = vld [vmem:[%s196 + $0x20] sm:$0xff]
      %v202 = vld [vmem:[%s196 + $0x28] sm:$0xff]
      %v203 = vld [vmem:[%s196 + $0x30] sm:$0xff]
      %v204 = vld [vmem:[%s196 + $0x38] sm:$0xff]
      %vm205 = vcmask 523264
      %v207 = vsel %vm205, %v184, 0
      %v210 = vsel %vm205, %v185, 0
      %212 = vmatpush.msra.mxu0 0.0
      %213 = vmatpush.msra.mxu0 0.0
      %214 = vmatpush.msra.mxu0 0.0
      %215 = vmatpush.msra.mxu0 0.0
      %216 = vmatpush.msra.mxu0 0.0
      %217 = vmatpush.msra.mxu0 0.0
      %218 = vmatpush.msra.mxu0 0.0
      %219 = vmatpush.msra.mxu0 0.0
      %220 = vmatpush.msra.mxu0 %v204
      %221 = vmatpush.msra.mxu0 %v203
      %222 = vmatpush.msra.mxu0 %v202
      %223 = vmatpush.msra.mxu0 %v201
      %224 = vmatpush.msra.mxu0 %v200
      %225 = vmatpush.msra.mxu0 %v199
      %226 = vmatpush.msra.mxu0 %v198
      %227 = vmatpush.msra.mxu0 %v197
      %228 = vmatmul.f32.gmra.mxu0 %v207
      %v229 = vpop.f32.mrf.mxu0
      %v230 = vadd.f32 0.0, %v229
      %231 = vmatmul.f32.gmra.mxu0 %v210
      %v232 = vpop.f32.mrf.mxu0
      %v233 = vadd.f32 0.0, %v232
      %234 = vdwg.mxu0
      %v236 = vsel %vm205, %v182, 0
      %v239 = vsel %vm205, %v183, 0
      %241 = vmatpush.msra.mxu0 0.0
      %242 = vmatpush.msra.mxu0 0.0
      %243 = vmatpush.msra.mxu0 0.0
      %244 = vmatpush.msra.mxu0 0.0
      %245 = vmatpush.msra.mxu0 0.0
      %246 = vmatpush.msra.mxu0 0.0
      %247 = vmatpush.msra.mxu0 0.0
      %248 = vmatpush.msra.mxu0 0.0
      %249 = vmatpush.msra.mxu0 %v195
      %250 = vmatpush.msra.mxu0 %v194
      %251 = vmatpush.msra.mxu0 %v193
      %252 = vmatpush.msra.mxu0 %v192
      %253 = vmatpush.msra.mxu0 %v191
      %254 = vmatpush.msra.mxu0 %v190
      %255 = vmatpush.msra.mxu0 %v189
      %256 = vmatpush.msra.mxu0 %v188
      %257 = vmatmul.f32.gmra.mxu0 %v236
      %v258 = vpop.f32.mrf.mxu0
      %v259 = vadd.f32 %v230, %v258
      %260 = vmatmul.f32.gmra.mxu0 %v239
      %v261 = vpop.f32.mrf.mxu0
      %v262 = vadd.f32 %v233, %v261
      %263 = vdwg.mxu0
      %s264 = scalar_lea.vmem %s1, 128
      %v265 = vld [vmem:[%s264] sm:$0xff]
      %v266 = vld [vmem:[%s264 + $0x8] sm:$0xff]
      %v267 = vld [vmem:[%s264 + $0x10] sm:$0xff]
      %v268 = vld [vmem:[%s264 + $0x18] sm:$0xff]
      %v269 = vld [vmem:[%s264 + $0x20] sm:$0xff]
      %v270 = vld [vmem:[%s264 + $0x28] sm:$0xff]
      %v271 = vld [vmem:[%s264 + $0x30] sm:$0xff]
      %v272 = vld [vmem:[%s264 + $0x38] sm:$0xff]
      %v274 = vsel %vm205, %v186, 0
      %v277 = vsel %vm205, %v187, 0
      %279 = vmatpush.msra.mxu0 0.0
      %280 = vmatpush.msra.mxu0 0.0
      %281 = vmatpush.msra.mxu0 0.0
      %282 = vmatpush.msra.mxu0 0.0
      %283 = vmatpush.msra.mxu0 0.0
      %284 = vmatpush.msra.mxu0 0.0
      %285 = vmatpush.msra.mxu0 0.0
      %286 = vmatpush.msra.mxu0 0.0
      %287 = vmatpush.msra.mxu0 %v272
      %288 = vmatpush.msra.mxu0 %v271
      %289 = vmatpush.msra.mxu0 %v270
      %290 = vmatpush.msra.mxu0 %v269
      %291 = vmatpush.msra.mxu0 %v268
      %292 = vmatpush.msra.mxu0 %v267
      %293 = vmatpush.msra.mxu0 %v266
      %294 = vmatpush.msra.mxu0 %v265
      %295 = vmatmul.f32.gmra.mxu0 %v274
      %v296 = vpop.f32.mrf.mxu0
      %v297 = vadd.f32 0.0, %v296
      %298 = vmatmul.f32.gmra.mxu0 %v277
      %v299 = vpop.f32.mrf.mxu0
      %v300 = vadd.f32 0.0, %v299
      %301 = vdwg.mxu0
      %v302 = vadd.f32 %v259, %v297
      %v303 = vadd.f32 %v262, %v300
      %vm306 = vcmask 1040384
      %v307 = vrot.slane %v302, 7
      %v308 = vrot.slane %v303, 7
      %v309 = vsel %vm306, %v307, %v308
      %v313 = vsel %vm306, 0.0, %v307
      %v314 = vsel %vm306, %v308, 0.0
      %315 = vst [vmem:[%s177] sm:$0xff] %v313
      %316 = vst [vmem:[%s177 + $0x8] sm:$0xff] %v309
      %317 = vst [vmem:[%s177 + $0x10] sm:$0x3] %v314
      %v318 = vadd.f32 %v302, %v303
      %v319 = vrot.slane %v318, 4
      %v320 = vadd.f32 %v318, %v319
      %v321 = vrot.slane %v320, 2
      %v322 = vadd.f32 %v320, %v321
      %v323 = vrot.slane %v322, 1
      %v324 = vadd.f32 %v322, %v323
      %325 = vst [vmem:[%s181] sm:$0x1] %v324
      %v326 = vmul.f32 %v302, %v302
      %v327 = vmul.f32 %v303, %v303
      %v328 = vadd.f32 %v326, %v327
      %v329 = vrot.slane %v328, 4
      %v330 = vadd.f32 %v328, %v329
      %v331 = vrot.slane %v330, 2
      %v332 = vadd.f32 %v330, %v331
      %v333 = vrot.slane %v332, 1
      %v334 = vadd.f32 %v332, %v333
      %335 = vst [vmem:[%s181 + $0x1] sm:$0x1] %v334
      %p336 = scmp.lt.s32.totalorder %s15, 1
      %s337 = scalar_select %p336, %s15, 1
      %s338 = smul.addr %s337, 3
      %s339 = smul.addr %s338, 8
      %s340 = scalar_lea.vmem %s2, %s339
      %p341 = scmp.lt.s32.totalorder %s15, 1
      %s342 = scalar_select %p341, %s15, 1
      %s343 = smul.addr %s342, 2
      %s344 = scalar_lea.vmem %s3, %s343
      // Predicated region
      $region29: #{double_conv2d.3} parent=27 // pred_check
        %p345 = pneg %p80
      $region30: #{double_conv2d.3} parent=27 // pred_check_branch
        %347 = sbr.rel (%p345) target = $region32
      $region31: #{double_conv2d.3} parent=27 // pred_region
        _
      $region32: #{double_conv2d.3} parent=27 // pred_fallthru
        _
      // Predicated region
      $region33: #{double_conv2d.3} parent=27 // pred_check
        %p348 = pneg %p106
      $region34: #{double_conv2d.3} parent=27 // pred_check_branch
        %350 = sbr.rel (%p348) target = $region36
      $region35: #{double_conv2d.3} parent=27 // pred_region
        _
      $region36: #{double_conv2d.3} parent=27 // pred_fallthru
        _
    $region28: #{double_conv2d.3} parent=5 // pred_fallthru
      _
    %p351 = scmp.le.s32.totalorder 2, %s10
    // Predicated region
    $region37: #{double_conv2d.3} parent=5 // pred_check
      %p352 = pneg %p351
    $region38: #{double_conv2d.3} parent=5 // pred_check_branch
      %354 = sbr.rel (%p352) target = $region40
    $region39: #{double_conv2d.3} parent=5 // pred_region
      %s355 = ssub.s32 %s10, 2
      // Predicated region
      $region41: #{double_conv2d.3} parent=39 // pred_check
        %p356 = pneg %p86
      $region42: #{double_conv2d.3} parent=39 // pred_check_branch
        %358 = sbr.rel (%p356) target = $region44
      $region43: #{double_conv2d.3} parent=39 // pred_region
        %p359 = scmp.lt.s32.totalorder %s16, 1
        %s360 = scalar_select %p359, %s16, 1
        %s361 = smul.addr %s360, 3
        %s362 = smul.addr %s361, 8
        %s363 = scalar_lea.vmem %s2, %s362
      $region44: #{double_conv2d.3} parent=39 // pred_fallthru
        _
      // Predicated region
      $region45: #{double_conv2d.3} parent=39 // pred_check
        %p364 = pneg %p112
      $region46: #{double_conv2d.3} parent=39 // pred_check_branch
        %366 = sbr.rel (%p364) target = $region48
      $region47: #{double_conv2d.3} parent=39 // pred_region
        %p367 = scmp.lt.s32.totalorder %s16, 1
        %s368 = scalar_select %p367, %s16, 1
        %s369 = smul.addr %s368, 2
        %s370 = scalar_lea.vmem %s3, %s369
      $region48: #{double_conv2d.3} parent=39 // pred_fallthru
        _
    $region40: #{double_conv2d.3} parent=5 // pred_fallthru
      _
  $region6: #{double_conv2d.3} parent=0 // loop_footer
    %s14 = sadd.s32 1, %s10
  $region7: #{double_conv2d.3} parent=0 // loop_footer_branch
    %9 = sbr.rel target = $region3
  $region8: #{double_conv2d.3} parent=0 // loop_exit
    _

// kernel: double_conv2d.4
$region0: #{double_conv2d.4}
  #allocation0 [shape = 'u32[]', space=smem, size = 0x4, offset = 0x4, fixed_abs, tag = 'smem constant byte address 0x4 - core index']
  #allocation1 [shape = 'u32[72,128]{1,0:T(1,128)}', space=vmem, size = 0x9000, scoped, tag = 'internal scratch']
  %s0 = inlined_call_operand.vmem [shape: f32[2,18,128], index: 0, kind: input, shape index: {}]
  %s1 = inlined_call_operand.vmem [shape: f32[1,128], index: 1, kind: input, shape index: {}]
  %s2 = inlined_call_operand.vmem [shape: f32[1,128], index: 2, kind: input, shape index: {}]
  %s3 = inlined_call_operand.vmem [shape: f32[3,128,128], index: 3, kind: input, shape index: {}]
  %s4 = inlined_call_operand.vmem [shape: f32[2,16,128], index: 4, kind: output, shape index: {0}]
  %s5 = inlined_call_operand.vmem [shape: f32[2,2,128], index: 5, kind: output, shape index: {1}]
  %6 = xla_tuple %s4, %s5
  %s7 = sld [smem:[#allocation0]]
  $region57: #{double_conv2d.4} parent=0
    _
  %s9 = ssub.s32 1, %s7
  %s10 = scalar_select 0, %s9, %s7
  loop: start=0, step=1, limit=4
  $region2: #{double_conv2d.4} parent=0 // loop_pre_header
    _
  $region3: #{double_conv2d.4} parent=0 // loop_header
    %s12 = sphi 0, %s16
    %p13 = scmp.ge.s32.totalorder %s12, 4
    %s22 = sphi 0, %s24
    %s25 = sphi 0, %s22
    %s26 = sphi 0, %s25
    %s42 = sphi 0, %s26
    %s46 = sphi 0, %s46
    %s48 = sphi 0, %s46
    %s49 = sphi 0, %s48
    %s63 = sphi 0, %s49
    %s67 = sphi 0, %s67
    %s69 = sphi 0, %s67
    %s70 = sphi 0, %s69
    %s84 = sphi 0, %s70
    %s88 = sphi 0, %s88
    %s90 = sphi 0, %s88
    %s91 = sphi 0, %s90
    %s105 = sphi 0, %s91
    %s111 = sphi 0, %s113
    %s114 = sphi 0, %s111
    %s115 = sphi 0, %s114
    %s131 = sphi 0, %s115
    %s137 = sphi 0, %s139
    %s140 = sphi 0, %s137
    %s141 = sphi 0, %s140
    %s157 = sphi 0, %s141
  $region4: #{double_conv2d.4} parent=0 // loop_header_branch
    %15 = sbr.rel (%p13) target = $region8
  $region5: #{double_conv2d.4} parent=0 // loop_body
    %s17 = ssub.s32 %s12, 1
    %s18 = ssub.s32 %s12, 2
    %s19 = sadd.s32 %s12, 1
    %s20 = ssub.s32 %s12, %s19
    %p21 = scmp.eq.s32.totalorder %s20, 0
    %s23 = sadd.s32 %s22, 1
    %s24 = scalar_select %p21, %s22, %s23
    %p27 = pneg %p21
    %p28 = scmp.eq.s32.totalorder %s12, 1
    %p29 = por %p27, %p28
    %p30 = scmp.ne.s32.totalorder %s22, %s25
    %p31 = scmp.eq.s32.totalorder %s12, 0
    %p32 = por %p30, %p31
    %p33 = scmp.ne.s32.totalorder %s22, %s25
    %p34 = scmp.eq.s32.totalorder %s17, 1
    %p35 = por %p33, %p34
    %p36 = scmp.ne.s32.totalorder %s25, %s26
    %p37 = scmp.eq.s32.totalorder %s17, 0
    %p38 = por %p36, %p37
    %p39 = scmp.ne.s32.totalorder %s25, %s26
    %p40 = scmp.eq.s32.totalorder %s18, 1
    %p41 = por %p39, %p40
    %p43 = scmp.ne.s32.totalorder %s26, %s42
    %p44 = scmp.eq.s32.totalorder %s18, 0
    %p45 = por %p43, %p44
    %s47 = sadd.s32 %s46, 1
    %p50 = scmp.eq.s32.totalorder %s12, 1
    %p51 = scmp.ne.s32.totalorder %s46, %s48
    %p52 = scmp.eq.s32.totalorder %s12, 0
    %p53 = por %p51, %p52
    %p54 = scmp.ne.s32.totalorder %s46, %s48
    %p55 = scmp.eq.s32.totalorder %s17, 1
    %p56 = por %p54, %p55
    %p57 = scmp.ne.s32.totalorder %s48, %s49
    %p58 = scmp.eq.s32.totalorder %s17, 0
    %p59 = por %p57, %p58
    %p60 = scmp.ne.s32.totalorder %s48, %s49
    %p61 = scmp.eq.s32.totalorder %s18, 1
    %p62 = por %p60, %p61
    %p64 = scmp.ne.s32.totalorder %s49, %s63
    %p65 = scmp.eq.s32.totalorder %s18, 0
    %p66 = por %p64, %p65
    %s68 = sadd.s32 %s67, 1
    %p71 = scmp.eq.s32.totalorder %s12, 1
    %p72 = scmp.ne.s32.totalorder %s67, %s69
    %p73 = scmp.eq.s32.totalorder %s12, 0
    %p74 = por %p72, %p73
    %p75 = scmp.ne.s32.totalorder %s67, %s69
    %p76 = scmp.eq.s32.totalorder %s17, 1
    %p77 = por %p75, %p76
    %p78 = scmp.ne.s32.totalorder %s69, %s70
    %p79 = scmp.eq.s32.totalorder %s17, 0
    %p80 = por %p78, %p79
    %p81 = scmp.ne.s32.totalorder %s69, %s70
    %p82 = scmp.eq.s32.totalorder %s18, 1
    %p83 = por %p81, %p82
    %p85 = scmp.ne.s32.totalorder %s70, %s84
    %p86 = scmp.eq.s32.totalorder %s18, 0
    %p87 = por %p85, %p86
    %s89 = sadd.s32 %s88, 1
    %p92 = scmp.eq.s32.totalorder %s12, 1
    %p93 = scmp.ne.s32.totalorder %s88, %s90
    %p94 = scmp.eq.s32.totalorder %s12, 0
    %p95 = por %p93, %p94
    %p96 = scmp.ne.s32.totalorder %s88, %s90
    %p97 = scmp.eq.s32.totalorder %s17, 1
    %p98 = por %p96, %p97
    %p99 = scmp.ne.s32.totalorder %s90, %s91
    %p100 = scmp.eq.s32.totalorder %s17, 0
    %p101 = por %p99, %p100
    %p102 = scmp.ne.s32.totalorder %s90, %s91
    %p103 = scmp.eq.s32.totalorder %s18, 1
    %p104 = por %p102, %p103
    %p106 = scmp.ne.s32.totalorder %s91, %s105
    %p107 = scmp.eq.s32.totalorder %s18, 0
    %p108 = por %p106, %p107
    %s109 = ssub.s32 %s12, %s19
    %p110 = scmp.eq.s32.totalorder %s109, 0
    %s112 = sadd.s32 %s111, 1
    %s113 = scalar_select %p110, %s111, %s112
    %p116 = pneg %p110
    %p117 = scmp.eq.s32.totalorder %s12, 1
    %p118 = por %p116, %p117
    %p119 = scmp.ne.s32.totalorder %s111, %s114
    %p120 = scmp.eq.s32.totalorder %s12, 0
    %p121 = por %p119, %p120
    %p122 = scmp.ne.s32.totalorder %s111, %s114
    %p123 = scmp.eq.s32.totalorder %s17, 1
    %p124 = por %p122, %p123
    %p125 = scmp.ne.s32.totalorder %s114, %s115
    %p126 = scmp.eq.s32.totalorder %s17, 0
    %p127 = por %p125, %p126
    %p128 = scmp.ne.s32.totalorder %s114, %s115
    %p129 = scmp.eq.s32.totalorder %s18, 1
    %p130 = por %p128, %p129
    %p132 = scmp.ne.s32.totalorder %s115, %s131
    %p133 = scmp.eq.s32.totalorder %s18, 0
    %p134 = por %p132, %p133
    %s135 = ssub.s32 %s12, %s19
    %p136 = scmp.eq.s32.totalorder %s135, 0
    %s138 = sadd.s32 %s137, 1
    %s139 = scalar_select %p136, %s137, %s138
    %p142 = pneg %p136
    %p143 = scmp.eq.s32.totalorder %s12, 1
    %p144 = por %p142, %p143
    %p145 = scmp.ne.s32.totalorder %s137, %s140
    %p146 = scmp.eq.s32.totalorder %s12, 0
    %p147 = por %p145, %p146
    %p148 = scmp.ne.s32.totalorder %s137, %s140
    %p149 = scmp.eq.s32.totalorder %s17, 1
    %p150 = por %p148, %p149
    %p151 = scmp.ne.s32.totalorder %s140, %s141
    %p152 = scmp.eq.s32.totalorder %s17, 0
    %p153 = por %p151, %p152
    %p154 = scmp.ne.s32.totalorder %s140, %s141
    %p155 = scmp.eq.s32.totalorder %s18, 1
    %p156 = por %p154, %p155
    %p158 = scmp.ne.s32.totalorder %s141, %s157
    %p159 = scmp.eq.s32.totalorder %s18, 0
    %p160 = por %p158, %p159
    %p161 = scmp.le.s32.totalorder 1, %s12
    %p162 = scmp.lt.s32.totalorder %s12, 3
    %p163 = pnand %p161, %p162
    %p164 = pneg %p163
    // Predicated region
    $region9: #{double_conv2d.4} parent=5 // pred_check
      _
    $region10: #{double_conv2d.4} parent=5 // pred_check_branch
      %166 = sbr.rel (%p163) target = $region12
    $region11: #{double_conv2d.4} parent=5 // pred_region
      %s167 = ssub.s32 %s12, 1
      // Predicated region
      $region13: #{double_conv2d.4} parent=11 // pred_check
        %p168 = pneg %p59
      $region14: #{double_conv2d.4} parent=11 // pred_check_branch
        %170 = sbr.rel (%p168) target = $region16
      $region15: #{double_conv2d.4} parent=11 // pred_region
        _
      $region16: #{double_conv2d.4} parent=11 // pred_fallthru
        _
      // Predicated region
      $region17: #{double_conv2d.4} parent=11 // pred_check
        %p171 = pneg %p80
      $region18: #{double_conv2d.4} parent=11 // pred_check_branch
        %173 = sbr.rel (%p171) target = $region20
      $region19: #{double_conv2d.4} parent=11 // pred_region
        _
      $region20: #{double_conv2d.4} parent=11 // pred_fallthru
        _
      // Predicated region
      $region21: #{double_conv2d.4} parent=11 // pred_check
        %p174 = pneg %p101
      $region22: #{double_conv2d.4} parent=11 // pred_check_branch
        %176 = sbr.rel (%p174) target = $region24
      $region23: #{double_conv2d.4} parent=11 // pred_region
        _
      $region24: #{double_conv2d.4} parent=11 // pred_fallthru
        _
    $region12: #{double_conv2d.4} parent=5 // pred_fallthru
      _
    %p177 = scmp.lt.s32.totalorder %s12, 2
    // Predicated region
    $region25: #{double_conv2d.4} parent=5 // pred_check
      %p178 = pneg %p177
    $region26: #{double_conv2d.4} parent=5 // pred_check_branch
      %180 = sbr.rel (%p178) target = $region28
    $region27: #{double_conv2d.4} parent=5 // pred_region
      // Predicated region
      $region29: #{double_conv2d.4} parent=27 // pred_check
        %p181 = pneg %p32
      $region30: #{double_conv2d.4} parent=27 // pred_check_branch
        %183 = sbr.rel (%p181) target = $region32
      $region31: #{double_conv2d.4} parent=27 // pred_region
        %p184 = scmp.lt.s32.totalorder %s12, 1
        %s185 = scalar_select %p184, %s12, 1
        %s186 = smul.addr %s185, 3
        %s187 = smul.addr %s186, 8
        %s188 = scalar_lea.vmem %s0, %s187
      $region32: #{double_conv2d.4} parent=27 // pred_fallthru
        _
    $region28: #{double_conv2d.4} parent=5 // pred_fallthru
      _
    %p189 = scmp.le.s32.totalorder 1, %s12
    %p190 = scmp.lt.s32.totalorder %s12, 3
    %p191 = pnand %p189, %p190
    %p192 = pneg %p191
    // Predicated region
    $region33: #{double_conv2d.4} parent=5 // pred_check
      _
    $region34: #{double_conv2d.4} parent=5 // pred_check_branch
      %194 = sbr.rel (%p191) target = $region36
    $region35: #{double_conv2d.4} parent=5 // pred_region
      %s195 = ssub.s32 %s12, 1
      %p196 = scmp.lt.s32.totalorder %s17, 1
      %s197 = scalar_select %p196, %s17, 1
      %s198 = smul.addr %s197, 3
      %s199 = smul.addr %s198, 8
      %s200 = scalar_lea.vmem %s0, %s199
      %p201 = pneg %p38
      %p202 = pneg %p35
      %p203 = pneg %p59
      %p204 = pneg %p56
      %p205 = pneg %p80
      %p206 = pneg %p77
      %p207 = pneg %p101
      %p208 = pneg %p98
      %p209 = pneg %p127
      %p210 = pneg %p124
      %p211 = scmp.lt.s32.totalorder %s17, 1
      %s212 = scalar_select %p211, %s17, 1
      %s213 = smul.addr %s212, 2
      %s214 = smul.addr %s213, 8
      %s215 = scalar_lea.vmem %s4, %s214
      %p216 = pneg %p153
      %p217 = pneg %p150
      %p218 = scmp.lt.s32.totalorder %s17, 1
      %s219 = scalar_select %p218, %s17, 1
      %s220 = smul.addr %s219, 2
      %s221 = scalar_lea.vmem %s5, %s220
      %p222 = scmp.lt.s32.totalorder %s17, 1
      %s223 = scalar_select %p222, %s17, 1
      %s224 = smul.addr %s223, 3
      %s225 = smul.addr %s224, 8
      %s226 = scalar_lea.vmem %s0, %s225
      %p227 = scmp.lt.s32.totalorder %s17, 1
      %s228 = scalar_select %p227, %s17, 1
      %s229 = smul.addr %s228, 2
      %s230 = smul.addr %s229, 8
      %s231 = scalar_lea.vmem %s4, %s230
      %p232 = scmp.lt.s32.totalorder %s17, 1
      %s233 = scalar_select %p232, %s17, 1
      %s234 = smul.addr %s233, 2
      %s235 = scalar_lea.vmem %s5, %s234
      %v236 = vld [vmem:[%s226] sm:$0xff]
      %v237 = vld [vmem:[%s226 + $0x8] sm:$0xff]
      %v238 = vld [vmem:[%s226 + $0x10] sm:$0x3]
      %v239 = vld [vmem:[%s1] sm:$0x1]
      %v241 = vperm.slane %v239, 0
      %v243 = vmul.f32 %v236, %v241
      %v244 = vmul.f32 %v237, %v241
      %v245 = vmul.f32 %v238, %v241
      %v246 = vld [vmem:[%s2] sm:$0x1]
      %v248 = vperm.slane %v246, 0
      %v250 = vadd.f32 %v243, %v248
      %v251 = vadd.f32 %v244, %v248
      %v252 = vadd.f32 %v245, %v248
      %v253 = vmax.f32 %v250, 0.0
      %v254 = vmax.f32 %v251, 0.0
      %v255 = vmax.f32 %v252, 0.0
      %v256 = vlaneseq
      %v257 = vshrl.u32 %v256, 7
      %v258 = vadd.s32 %v257, 8
      %v259 = vadd.s32 %v257, 16
      %vm260 = vcmp.ge.s32.totalorder %v257, 1
      %vm261 = vcmp.ge.s32.totalorder %v258, 1
      %vm262 = vcmp.ge.s32.totalorder %v259, 1
      %vm263 = vcmp.le.s32.totalorder %v257, 16
      %vm264 = vcmp.le.s32.totalorder %v258, 16
      %vm265 = vcmp.le.s32.totalorder %v259, 16
      %vm266 = vmand %vm260, %vm263
      %vm267 = vmand %vm261, %vm264
      %vm268 = vmand %vm262, %vm265
      %v269 = vsel %vm266, 1, 0
      %v270 = vsel %vm267, 1, 0
      %v271 = vsel %vm268, 1, 0
      %vm272 = vcmp.eq.s32.totalorder %v269, 1
      %vm273 = vcmp.eq.s32.totalorder %v270, 1
      %vm274 = vcmp.eq.s32.totalorder %v271, 1
      %v275 = vsel %vm272, %v253, 0.0
      %v276 = vsel %vm273, %v254, 0.0
      %v277 = vsel %vm274, %v255, 0.0
      %v278 = vld [vmem:[%s3] sm:$0xff]
      %v279 = vld [vmem:[%s3 + $0x8] sm:$0xff]
      %v280 = vld [vmem:[%s3 + $0x10] sm:$0xff]
      %v281 = vld [vmem:[%s3 + $0x18] sm:$0xff]
      %v282 = vld [vmem:[%s3 + $0x20] sm:$0xff]
      %v283 = vld [vmem:[%s3 + $0x28] sm:$0xff]
      %v284 = vld [vmem:[%s3 + $0x30] sm:$0xff]
      %v285 = vld [vmem:[%s3 + $0x38] sm:$0xff]
      %v286 = vld [vmem:[%s3 + $0x40] sm:$0xff]
      %v287 = vld [vmem:[%s3 + $0x48] sm:$0xff]
      %v288 = vld [vmem:[%s3 + $0x50] sm:$0xff]
      %v289 = vld [vmem:[%s3 + $0x58] sm:$0xff]
      %v290 = vld [vmem:[%s3 + $0x60] sm:$0xff]
      %v291 = vld [vmem:[%s3 + $0x68] sm:$0xff]
      %v292 = vld [vmem:[%s3 + $0x70] sm:$0xff]
      %v293 = vld [vmem:[%s3 + $0x78] sm:$0xff]
      %s294 = scalar_lea.vmem %s3, 128
      %v295 = vld [vmem:[%s294] sm:$0xff]
      %v296 = vld [vmem:[%s294 + $0x8] sm:$0xff]
      %v297 = vld [vmem:[%s294 + $0x10] sm:$0xff]
      %v298 = vld [vmem:[%s294 + $0x18] sm:$0xff]
      %v299 = vld [vmem:[%s294 + $0x20] sm:$0xff]
      %v300 = vld [vmem:[%s294 + $0x28] sm:$0xff]
      %v301 = vld [vmem:[%s294 + $0x30] sm:$0xff]
      %v302 = vld [vmem:[%s294 + $0x38] sm:$0xff]
      %v303 = vld [vmem:[%s294 + $0x40] sm:$0xff]
      %v304 = vld [vmem:[%s294 + $0x48] sm:$0xff]
      %v305 = vld [vmem:[%s294 + $0x50] sm:$0xff]
      %v306 = vld [vmem:[%s294 + $0x58] sm:$0xff]
      %v307 = vld [vmem:[%s294 + $0x60] sm:$0xff]
      %v308 = vld [vmem:[%s294 + $0x68] sm:$0xff]
      %v309 = vld [vmem:[%s294 + $0x70] sm:$0xff]
      %v310 = vld [vmem:[%s294 + $0x78] sm:$0xff]
      %vm314 = vcmask 1046528
      %v315 = vrot.slane %v275, 1
      %v316 = vrot.slane %v276, 1
      %v317 = vsel %vm314, %v315, %v316
      %v318 = vrot.slane %v277, 1
      %v319 = vsel %vm314, %v316, %v318
      %322 = vmatpush.msra.mxu0 %v310
      %323 = vmatpush.msra.mxu0 %v309
      %324 = vmatpush.msra.mxu0 %v308
      %325 = vmatpush.msra.mxu0 %v307
      %326 = vmatpush.msra.mxu0 %v306
      %327 = vmatpush.msra.mxu0 %v305
      %328 = vmatpush.msra.mxu0 %v304
      %329 = vmatpush.msra.mxu0 %v303
      %330 = vmatpush.msra.mxu0 %v302
      %331 = vmatpush.msra.mxu0 %v301
      %332 = vmatpush.msra.mxu0 %v300
      %333 = vmatpush.msra.mxu0 %v299
      %334 = vmatpush.msra.mxu0 %v298
      %335 = vmatpush.msra.mxu0 %v297
      %336 = vmatpush.msra.mxu0 %v296
      %337 = vmatpush.msra.mxu0 %v295
      %338 = vmatmul.f32.gmra.mxu0 %v317
      %v339 = vpop.f32.mrf.mxu0
      %v340 = vadd.f32 0.0, %v339
      %341 = vmatmul.f32.gmra.mxu0 %v319
      %v342 = vpop.f32.mrf.mxu0
      %v343 = vadd.f32 0.0, %v342
      %344 = vdwg.mxu0
      %345 = vmatpush.msra.mxu0 %v293
      %346 = vmatpush.msra.mxu0 %v292
      %347 = vmatpush.msra.mxu0 %v291
      %348 = vmatpush.msra.mxu0 %v290
      %349 = vmatpush.msra.mxu0 %v289
      %350 = vmatpush.msra.mxu0 %v288
      %351 = vmatpush.msra.mxu0 %v287
      %352 = vmatpush.msra.mxu0 %v286
      %353 = vmatpush.msra.mxu0 %v285
      %354 = vmatpush.msra.mxu0 %v284
      %355 = vmatpush.msra.mxu0 %v283
      %356 = vmatpush.msra.mxu0 %v282
      %357 = vmatpush.msra.mxu0 %v281
      %358 = vmatpush.msra.mxu0 %v280
      %359 = vmatpush.msra.mxu0 %v279
      %360 = vmatpush.msra.mxu0 %v278
      %361 = vmatmul.f32.gmra.mxu0 %v275
      %v362 = vpop.f32.mrf.mxu0
      %v363 = vadd.f32 %v340, %v362
      %364 = vmatmul.f32.gmra.mxu0 %v276
      %v365 = vpop.f32.mrf.mxu0
      %v366 = vadd.f32 %v343, %v365
      %367 = vdwg.mxu0
      %s368 = scalar_lea.vmem %s3, 256
      %v369 = vld [vmem:[%s368] sm:$0xff]
      %v370 = vld [vmem:[%s368 + $0x8] sm:$0xff]
      %v371 = vld [vmem:[%s368 + $0x10] sm:$0xff]
      %v372 = vld [vmem:[%s368 + $0x18] sm:$0xff]
      %v373 = vld [vmem:[%s368 + $0x20] sm:$0xff]
      %v374 = vld [vmem:[%s368 + $0x28] sm:$0xff]
      %v375 = vld [vmem:[%s368 + $0x30] sm:$0xff]
      %v376 = vld [vmem:[%s368 + $0x38] sm:$0xff]
      %v377 = vld [vmem:[%s368 + $0x40] sm:$0xff]
      %v378 = vld [vmem:[%s368 + $0x48] sm:$0xff]
      %v379 = vld [vmem:[%s368 + $0x50] sm:$0xff]
      %v380 = vld [vmem:[%s368 + $0x58] sm:$0xff]
      %v381 = vld [vmem:[%s368 + $0x60] sm:$0xff]
      %v382 = vld [vmem:[%s368 + $0x68] sm:$0xff]
      %v383 = vld [vmem:[%s368 + $0x70] sm:$0xff]
      %v384 = vld [vmem:[%s368 + $0x78] sm:$0xff]
      %vm385 = vcmask 1045504
      %v386 = vrot.slane %v275, 2
      %v387 = vrot.slane %v276, 2
      %v388 = vsel %vm385, %v386, %v387
      %v389 = vrot.slane %v277, 2
      %v390 = vsel %vm385, %v387, %v389
      %393 = vmatpush.msra.mxu0 %v384
      %394 = vmatpush.msra.mxu0 %v383
      %395 = vmatpush.msra.mxu0 %v382
      %396 = vmatpush.msra.mxu0 %v381
      %397 = vmatpush.msra.mxu0 %v380
      %398 = vmatpush.msra.mxu0 %v379
      %399 = vmatpush.msra.mxu0 %v378
      %400 = vmatpush.msra.mxu0 %v377
      %401 = vmatpush.msra.mxu0 %v376
      %402 = vmatpush.msra.mxu0 %v375
      %403 = vmatpush.msra.mxu0 %v374
      %404 = vmatpush.msra.mxu0 %v373
      %405 = vmatpush.msra.mxu0 %v372
      %406 = vmatpush.msra.mxu0 %v371
      %407 = vmatpush.msra.mxu0 %v370
      %408 = vmatpush.msra.mxu0 %v369
      %409 = vmatmul.f32.gmra.mxu0 %v388
      %v410 = vpop.f32.mrf.mxu0
      %v411 = vadd.f32 0.0, %v410
      %412 = vmatmul.f32.gmra.mxu0 %v390
      %v413 = vpop.f32.mrf.mxu0
      %v414 = vadd.f32 0.0, %v413
      %415 = vdwg.mxu0
      %v416 = vadd.f32 %v363, %v411
      %v417 = vadd.f32 %v366, %v414
      %418 = vst [vmem:[%s231] sm:$0xff] %v416
      %419 = vst [vmem:[%s231 + $0x8] sm:$0xff] %v417
      %v420 = vadd.f32 %v416, %v417
      %v421 = vrot.slane %v420, 4
      %v422 = vadd.f32 %v420, %v421
      %v423 = vrot.slane %v422, 2
      %v424 = vadd.f32 %v422, %v423
      %v425 = vrot.slane %v424, 1
      %v426 = vadd.f32 %v424, %v425
      %427 = vst [vmem:[%s235] sm:$0x1] %v426
      %v428 = vmul.f32 %v416, %v416
      %v429 = vmul.f32 %v417, %v417
      %v430 = vadd.f32 %v428, %v429
      %v431 = vrot.slane %v430, 4
      %v432 = vadd.f32 %v430, %v431
      %v433 = vrot.slane %v432, 2
      %v434 = vadd.f32 %v432, %v433
      %v435 = vrot.slane %v434, 1
      %v436 = vadd.f32 %v434, %v435
      %437 = vst [vmem:[%s235 + $0x1] sm:$0x1] %v436
      %p438 = scmp.lt.s32.totalorder %s17, 1
      %s439 = scalar_select %p438, %s17, 1
      %s440 = smul.addr %s439, 2
      %s441 = smul.addr %s440, 8
      %s442 = scalar_lea.vmem %s4, %s441
      %p443 = scmp.lt.s32.totalorder %s17, 1
      %s444 = scalar_select %p443, %s17, 1
      %s445 = smul.addr %s444, 2
      %s446 = scalar_lea.vmem %s5, %s445
      // Predicated region
      $region37: #{double_conv2d.4} parent=35 // pred_check
        %p447 = pneg %p124
      $region38: #{double_conv2d.4} parent=35 // pred_check_branch
        %449 = sbr.rel (%p447) target = $region40
      $region39: #{double_conv2d.4} parent=35 // pred_region
        _
      $region40: #{double_conv2d.4} parent=35 // pred_fallthru
        _
      // Predicated region
      $region41: #{double_conv2d.4} parent=35 // pred_check
        %p450 = pneg %p150
      $region42: #{double_conv2d.4} parent=35 // pred_check_branch
        %452 = sbr.rel (%p450) target = $region44
      $region43: #{double_conv2d.4} parent=35 // pred_region
        _
      $region44: #{double_conv2d.4} parent=35 // pred_fallthru
        _
    $region36: #{double_conv2d.4} parent=5 // pred_fallthru
      _
    %p453 = scmp.le.s32.totalorder 2, %s12
    // Predicated region
    $region45: #{double_conv2d.4} parent=5 // pred_check
      %p454 = pneg %p453
    $region46: #{double_conv2d.4} parent=5 // pred_check_branch
      %456 = sbr.rel (%p454) target = $region48
    $region47: #{double_conv2d.4} parent=5 // pred_region
      %s457 = ssub.s32 %s12, 2
      // Predicated region
      $region49: #{double_conv2d.4} parent=47 // pred_check
        %p458 = pneg %p130
      $region50: #{double_conv2d.4} parent=47 // pred_check_branch
        %460 = sbr.rel (%p458) target = $region52
      $region51: #{double_conv2d.4} parent=47 // pred_region
        %p461 = scmp.lt.s32.totalorder %s18, 1
        %s462 = scalar_select %p461, %s18, 1
        %s463 = smul.addr %s462, 2
        %s464 = smul.addr %s463, 8
        %s465 = scalar_lea.vmem %s4, %s464
      $region52: #{double_conv2d.4} parent=47 // pred_fallthru
        _
      // Predicated region
      $region53: #{double_conv2d.4} parent=47 // pred_check
        %p466 = pneg %p156
      $region54: #{double_conv2d.4} parent=47 // pred_check_branch
        %468 = sbr.rel (%p466) target = $region56
      $region55: #{double_conv2d.4} parent=47 // pred_region
        %p469 = scmp.lt.s32.totalorder %s18, 1
        %s470 = scalar_select %p469, %s18, 1
        %s471 = smul.addr %s470, 2
        %s472 = scalar_lea.vmem %s5, %s471
      $region56: #{double_conv2d.4} parent=47 // pred_fallthru
        _
    $region48: #{double_conv2d.4} parent=5 // pred_fallthru
      _
  $region6: #{double_conv2d.4} parent=0 // loop_footer
    %s16 = sadd.s32 1, %s12
  $region7: #{double_conv2d.4} parent=0 // loop_footer_branch
    %11 = sbr.rel target = $region3
  $region8: #{double_conv2d.4} parent=0 // loop_exit
    _

// kernel: double_conv2d.5
$region0: #{double_conv2d.5}
  #allocation0 [shape = 'u32[]', space=smem, size = 0x4, offset = 0x4, fixed_abs, tag = 'smem constant byte address 0x4 - core index']
  #allocation1 [shape = 'u32[72,128]{1,0:T(1,128)}', space=vmem, size = 0x9000, scoped, tag = 'internal scratch']
  %s0 = inlined_call_operand.vmem [shape: f32[2,16,128], index: 0, kind: input, shape index: {}]
  %s1 = inlined_call_operand.vmem [shape: f32[1,128], index: 1, kind: input, shape index: {}]
  %s2 = inlined_call_operand.vmem [shape: f32[1,128], index: 2, kind: input, shape index: {}]
  %s3 = inlined_call_operand.vmem [shape: f32[2,16,128], index: 3, kind: output, shape index: {}]
  %s4 = sld [smem:[#allocation0]]
  $region45: #{double_conv2d.5} parent=0
    _
  %s6 = ssub.s32 1, %s4
  %s7 = scalar_select 0, %s6, %s4
  loop: start=0, step=1, limit=4
  $region2: #{double_conv2d.5} parent=0 // loop_pre_header
    _
  $region3: #{double_conv2d.5} parent=0 // loop_header
    %s9 = sphi 0, %s13
    %p10 = scmp.ge.s32.totalorder %s9, 4
    %s19 = sphi 0, %s21
    %s22 = sphi 0, %s19
    %s23 = sphi 0, %s22
    %s39 = sphi 0, %s23
    %s43 = sphi 0, %s43
    %s45 = sphi 0, %s43
    %s46 = sphi 0, %s45
    %s60 = sphi 0, %s46
    %s64 = sphi 0, %s64
    %s66 = sphi 0, %s64
    %s67 = sphi 0, %s66
    %s81 = sphi 0, %s67
    %s87 = sphi 0, %s89
    %s90 = sphi 0, %s87
    %s91 = sphi 0, %s90
    %s107 = sphi 0, %s91
  $region4: #{double_conv2d.5} parent=0 // loop_header_branch
    %12 = sbr.rel (%p10) target = $region8
  $region5: #{double_conv2d.5} parent=0 // loop_body
    %s14 = ssub.s32 %s9, 1
    %s15 = ssub.s32 %s9, 2
    %s16 = sadd.s32 %s9, 1
    %s17 = ssub.s32 %s9, %s16
    %p18 = scmp.eq.s32.totalorder %s17, 0
    %s20 = sadd.s32 %s19, 1
    %s21 = scalar_select %p18, %s19, %s20
    %p24 = pneg %p18
    %p25 = scmp.eq.s32.totalorder %s9, 1
    %p26 = por %p24, %p25
    %p27 = scmp.ne.s32.totalorder %s19, %s22
    %p28 = scmp.eq.s32.totalorder %s9, 0
    %p29 = por %p27, %p28
    %p30 = scmp.ne.s32.totalorder %s19, %s22
    %p31 = scmp.eq.s32.totalorder %s14, 1
    %p32 = por %p30, %p31
    %p33 = scmp.ne.s32.totalorder %s22, %s23
    %p34 = scmp.eq.s32.totalorder %s14, 0
    %p35 = por %p33, %p34
    %p36 = scmp.ne.s32.totalorder %s22, %s23
    %p37 = scmp.eq.s32.totalorder %s15, 1
    %p38 = por %p36, %p37
    %p40 = scmp.ne.s32.totalorder %s23, %s39
    %p41 = scmp.eq.s32.totalorder %s15, 0
    %p42 = por %p40, %p41
    %s44 = sadd.s32 %s43, 1
    %p47 = scmp.eq.s32.totalorder %s9, 1
    %p48 = scmp.ne.s32.totalorder %s43, %s45
    %p49 = scmp.eq.s32.totalorder %s9, 0
    %p50 = por %p48, %p49
    %p51 = scmp.ne.s32.totalorder %s43, %s45
    %p52 = scmp.eq.s32.totalorder %s14, 1
    %p53 = por %p51, %p52
    %p54 = scmp.ne.s32.totalorder %s45, %s46
    %p55 = scmp.eq.s32.totalorder %s14, 0
    %p56 = por %p54, %p55
    %p57 = scmp.ne.s32.totalorder %s45, %s46
    %p58 = scmp.eq.s32.totalorder %s15, 1
    %p59 = por %p57, %p58
    %p61 = scmp.ne.s32.totalorder %s46, %s60
    %p62 = scmp.eq.s32.totalorder %s15, 0
    %p63 = por %p61, %p62
    %s65 = sadd.s32 %s64, 1
    %p68 = scmp.eq.s32.totalorder %s9, 1
    %p69 = scmp.ne.s32.totalorder %s64, %s66
    %p70 = scmp.eq.s32.totalorder %s9, 0
    %p71 = por %p69, %p70
    %p72 = scmp.ne.s32.totalorder %s64, %s66
    %p73 = scmp.eq.s32.totalorder %s14, 1
    %p74 = por %p72, %p73
    %p75 = scmp.ne.s32.totalorder %s66, %s67
    %p76 = scmp.eq.s32.totalorder %s14, 0
    %p77 = por %p75, %p76
    %p78 = scmp.ne.s32.totalorder %s66, %s67
    %p79 = scmp.eq.s32.totalorder %s15, 1
    %p80 = por %p78, %p79
    %p82 = scmp.ne.s32.totalorder %s67, %s81
    %p83 = scmp.eq.s32.totalorder %s15, 0
    %p84 = por %p82, %p83
    %s85 = ssub.s32 %s9, %s16
    %p86 = scmp.eq.s32.totalorder %s85, 0
    %s88 = sadd.s32 %s87, 1
    %s89 = scalar_select %p86, %s87, %s88
    %p92 = pneg %p86
    %p93 = scmp.eq.s32.totalorder %s9, 1
    %p94 = por %p92, %p93
    %p95 = scmp.ne.s32.totalorder %s87, %s90
    %p96 = scmp.eq.s32.totalorder %s9, 0
    %p97 = por %p95, %p96
    %p98 = scmp.ne.s32.totalorder %s87, %s90
    %p99 = scmp.eq.s32.totalorder %s14, 1
    %p100 = por %p98, %p99
    %p101 = scmp.ne.s32.totalorder %s90, %s91
    %p102 = scmp.eq.s32.totalorder %s14, 0
    %p103 = por %p101, %p102
    %p104 = scmp.ne.s32.totalorder %s90, %s91
    %p105 = scmp.eq.s32.totalorder %s15, 1
    %p106 = por %p104, %p105
    %p108 = scmp.ne.s32.totalorder %s91, %s107
    %p109 = scmp.eq.s32.totalorder %s15, 0
    %p110 = por %p108, %p109
    %p111 = scmp.le.s32.totalorder 1, %s9
    %p112 = scmp.lt.s32.totalorder %s9, 3
    %p113 = pnand %p111, %p112
    %p114 = pneg %p113
    // Predicated region
    $region9: #{double_conv2d.5} parent=5 // pred_check
      _
    $region10: #{double_conv2d.5} parent=5 // pred_check_branch
      %116 = sbr.rel (%p113) target = $region12
    $region11: #{double_conv2d.5} parent=5 // pred_region
      %s117 = ssub.s32 %s9, 1
      // Predicated region
      $region13: #{double_conv2d.5} parent=11 // pred_check
        %p118 = pneg %p56
      $region14: #{double_conv2d.5} parent=11 // pred_check_branch
        %120 = sbr.rel (%p118) target = $region16
      $region15: #{double_conv2d.5} parent=11 // pred_region
        _
      $region16: #{double_conv2d.5} parent=11 // pred_fallthru
        _
      // Predicated region
      $region17: #{double_conv2d.5} parent=11 // pred_check
        %p121 = pneg %p77
      $region18: #{double_conv2d.5} parent=11 // pred_check_branch
        %123 = sbr.rel (%p121) target = $region20
      $region19: #{double_conv2d.5} parent=11 // pred_region
        _
      $region20: #{double_conv2d.5} parent=11 // pred_fallthru
        _
    $region12: #{double_conv2d.5} parent=5 // pred_fallthru
      _
    %p124 = scmp.lt.s32.totalorder %s9, 2
    // Predicated region
    $region21: #{double_conv2d.5} parent=5 // pred_check
      %p125 = pneg %p124
    $region22: #{double_conv2d.5} parent=5 // pred_check_branch
      %127 = sbr.rel (%p125) target = $region24
    $region23: #{double_conv2d.5} parent=5 // pred_region
      // Predicated region
      $region25: #{double_conv2d.5} parent=23 // pred_check
        %p128 = pneg %p29
      $region26: #{double_conv2d.5} parent=23 // pred_check_branch
        %130 = sbr.rel (%p128) target = $region28
      $region27: #{double_conv2d.5} parent=23 // pred_region
        %p131 = scmp.lt.s32.totalorder %s9, 1
        %s132 = scalar_select %p131, %s9, 1
        %s133 = smul.addr %s132, 2
        %s134 = smul.addr %s133, 8
        %s135 = scalar_lea.vmem %s0, %s134
      $region28: #{double_conv2d.5} parent=23 // pred_fallthru
        _
    $region24: #{double_conv2d.5} parent=5 // pred_fallthru
      _
    %p136 = scmp.le.s32.totalorder 1, %s9
    %p137 = scmp.lt.s32.totalorder %s9, 3
    %p138 = pnand %p136, %p137
    %p139 = pneg %p138
    // Predicated region
    $region29: #{double_conv2d.5} parent=5 // pred_check
      _
    $region30: #{double_conv2d.5} parent=5 // pred_check_branch
      %141 = sbr.rel (%p138) target = $region32
    $region31: #{double_conv2d.5} parent=5 // pred_region
      %s142 = ssub.s32 %s9, 1
      %p143 = scmp.lt.s32.totalorder %s14, 1
      %s144 = scalar_select %p143, %s14, 1
      %s145 = smul.addr %s144, 2
      %s146 = smul.addr %s145, 8
      %s147 = scalar_lea.vmem %s0, %s146
      %p148 = pneg %p35
      %p149 = pneg %p32
      %p150 = pneg %p56
      %p151 = pneg %p53
      %p152 = pneg %p77
      %p153 = pneg %p74
      %p154 = pneg %p103
      %p155 = pneg %p100
      %p156 = scmp.lt.s32.totalorder %s14, 1
      %s157 = scalar_select %p156, %s14, 1
      %s158 = smul.addr %s157, 2
      %s159 = smul.addr %s158, 8
      %s160 = scalar_lea.vmem %s3, %s159
      %p161 = scmp.lt.s32.totalorder %s14, 1
      %s162 = scalar_select %p161, %s14, 1
      %s163 = smul.addr %s162, 2
      %s164 = smul.addr %s163, 8
      %s165 = scalar_lea.vmem %s0, %s164
      %p166 = scmp.lt.s32.totalorder %s14, 1
      %s167 = scalar_select %p166, %s14, 1
      %s168 = smul.addr %s167, 2
      %s169 = smul.addr %s168, 8
      %s170 = scalar_lea.vmem %s3, %s169
      %v171 = vld [vmem:[%s165] sm:$0xff]
      %v172 = vld [vmem:[%s165 + $0x8] sm:$0xff]
      %v173 = vld [vmem:[%s1] sm:$0x1]
      %v175 = vperm.slane %v173, 0
      %v177 = vmul.f32 %v171, %v175
      %v178 = vmul.f32 %v172, %v175
      %v179 = vld [vmem:[%s2] sm:$0x1]
      %v181 = vperm.slane %v179, 0
      %v183 = vadd.f32 %v177, %v181
      %v184 = vadd.f32 %v178, %v181
      %v185 = vmax.f32 %v183, 0.0
      %v186 = vmax.f32 %v184, 0.0
      %187 = vst [vmem:[%s170] sm:$0xff] %v185
      %188 = vst [vmem:[%s170 + $0x8] sm:$0xff] %v186
      %p189 = scmp.lt.s32.totalorder %s14, 1
      %s190 = scalar_select %p189, %s14, 1
      %s191 = smul.addr %s190, 2
      %s192 = smul.addr %s191, 8
      %s193 = scalar_lea.vmem %s3, %s192
      // Predicated region
      $region33: #{double_conv2d.5} parent=31 // pred_check
        %p194 = pneg %p100
      $region34: #{double_conv2d.5} parent=31 // pred_check_branch
        %196 = sbr.rel (%p194) target = $region36
      $region35: #{double_conv2d.5} parent=31 // pred_region
        _
      $region36: #{double_conv2d.5} parent=31 // pred_fallthru
        _
    $region32: #{double_conv2d.5} parent=5 // pred_fallthru
      _
    %p197 = scmp.le.s32.totalorder 2, %s9
    // Predicated region
    $region37: #{double_conv2d.5} parent=5 // pred_check
      %p198 = pneg %p197
    $region38: #{double_conv2d.5} parent=5 // pred_check_branch
      %200 = sbr.rel (%p198) target = $region40
    $region39: #{double_conv2d.5} parent=5 // pred_region
      %s201 = ssub.s32 %s9, 2
      // Predicated region
      $region41: #{double_conv2d.5} parent=39 // pred_check
        %p202 = pneg %p106
      $region42: #{double_conv2d.5} parent=39 // pred_check_branch
        %204 = sbr.rel (%p202) target = $region44
      $region43: #{double_conv2d.5} parent=39 // pred_region
        %p205 = scmp.lt.s32.totalorder %s15, 1
        %s206 = scalar_select %p205, %s15, 1
        %s207 = smul.addr %s206, 2
        %s208 = smul.addr %s207, 8
        %s209 = scalar_lea.vmem %s3, %s208
      $region44: #{double_conv2d.5} parent=39 // pred_fallthru
        _
    $region40: #{double_conv2d.5} parent=5 // pred_fallthru
      _
  $region6: #{double_conv2d.5} parent=0 // loop_footer
    %s13 = sadd.s32 1, %s9
  $region7: #{double_conv2d.5} parent=0 // loop_footer_branch
    %8 = sbr.rel target = $region3
  $region8: #{double_conv2d.5} parent=0 // loop_exit
    _

</llo_original>
